<compile_context>
chip_gen: v7x
topology: tpu7x:2x2x1
jax: 0.10.0
libtpu: 0.0.40
codegen_flags: <defaults>
</compile_context>

<pallas_src>
import functools

import jax
import jax.numpy as jnp
import numpy as np
from jax import lax
from jax.experimental import pallas as pl
from jax.experimental.pallas import tpu as pltpu

# ----------------------------- configuration --------------------------------
DIM_IN = 32      # dim_in
DIM_OUT = 64     # dim_out
T_DIM = 16       # temporal_dim
N_GROUPS = 8     # n_norm_groups (must divide DIM_OUT)
EPS = 1e-5       # torch.nn.GroupNorm default eps

PACK = 2                     # batch rows packed per lane-row ("row-pair packing")
PIN = PACK * DIM_IN          # 64   packed input width
PT = PACK * T_DIM            # 32   packed t_emb width
PC = PACK * DIM_OUT          # 128  packed channel width (one full lane span)
CHUNK = 64                   # packed rows per inner fori_loop iteration


# ------------------------------ helpers --------------------------------------
def _silu(x):
    return x * jax.nn.sigmoid(x)


def _round_up(n, m):
    return ((n + m - 1) // m) * m


def _group_norm_packed(h, avg2, gamma, beta):
    """GroupNorm on row-pair-packed activations (rows, PC).

    Statistics via ONE lane-dense bf16 MXU matmul (f32 accumulate):
        [mean | E[h^2]] = [h | h*h] @ blockdiag(A, A)
    where A[i, j] = 1/group_size iff lanes i, j belong to the same
    (packed-row-half, group).  The block-diagonal structure keeps the two
    packed batch rows exactly independent.  Biased variance (torch semantics).
    All elementwise math stays f32.
    """
    hh = jnp.concatenate([h, h * h], axis=-1).astype(jnp.bfloat16)  # 128-aligned
    stats = jnp.dot(hh, avg2, preferred_element_type=jnp.float32)
    mean = stats[:, :PC]
    msq = stats[:, PC:]
    var = jnp.maximum(msq - mean * mean, 0.0)
    return (h - mean) * lax.rsqrt(var + EPS) * gamma + beta


# ------------------------------ kernel body ----------------------------------
def temporal_resblock_kernel(
    x_ref, t_ref,
    w1r_ref, b1r_ref,          # packed [lin1 | residual] weight/bias
    wt_ref, bt_ref,            # packed temporal projection ('+1' folded into bias)
    w2_ref, b2_ref,            # packed block-diag lin2
    g1_ref, be1_ref, g2_ref, be2_ref,
    avg2_ref,                  # (2*PC, 2*PC) merged group-averaging matrix (bf16)
    o_ref,
):
    n_chunks = x_ref.shape[0] // CHUNK

    def body(c, carry):
        r0 = pl.multiple_of(c * CHUNK, CHUNK)
        x = x_ref[pl.ds(r0, CHUNK), :]                  # (CHUNK, PIN) f32
        t = t_ref[pl.ds(r0, CHUNK), :]                  # (CHUNK, PT)  f32

        # Front end: two bf16 MXU matmuls; every output slab 128-lane aligned.
        y = jnp.dot(x.astype(jnp.bfloat16), w1r_ref[...],
                    preferred_element_type=jnp.float32) + b1r_ref[...]
        h, res = y[:, :PC], y[:, PC:]                   # lin1 | residual proj

        tp = jnp.dot(_silu(t).astype(jnp.bfloat16), wt_ref[...],
                     preferred_element_type=jnp.float32) + bt_ref[...]
        scale_p1, shift = tp[:, :PC], tp[:, PC:]        # (scale + 1) | shift

        # norm1 -> FiLM -> SiLU (f32 VPU/EUP).
        h = _group_norm_packed(h, avg2_ref[...], g1_ref[...], be1_ref[...])
        h = _silu(h * scale_p1 + shift)

        # lin2 (block-diag packed, bf16 MXU, f32 accumulate).
        h = jnp.dot(h.astype(jnp.bfloat16), w2_ref[...],
                    preferred_element_type=jnp.float32) + b2_ref[...]

        # norm2 on (lin2 + residual) -> SiLU; lane-dense unmasked store.
        out = _silu(_group_norm_packed(h + res, avg2_ref[...],
                                       g2_ref[...], be2_ref[...]))
        o_ref[pl.ds(r0, CHUNK), :] = out.astype(o_ref.dtype)
        return carry

    lax.fori_loop(0, n_chunks, body, 0)


# ------------------------------ wrapper --------------------------------------
def pack_params(params):
    """One-time wrapper-side packing into row-pair-packed, block-diagonal,
    lane-aligned weights (done outside the hot path)."""
    (w1, b1, g1, be1, w2, b2, g2, be2, wt, bt, wres) = params
    f32, bf16 = jnp.float32, jnp.bfloat16
    C = DIM_OUT

    # [lin1 | residual]: (PIN, 2*PC), columns = [h_A | h_B | res_A | res_B].
    w1r = jnp.zeros((PIN, 2 * PC), f32)
    w1r = w1r.at[:DIM_IN, 0 * C:1 * C].set(w1)
    w1r = w1r.at[DIM_IN:, 1 * C:2 * C].set(w1)
    w1r = w1r.at[:DIM_IN, 2 * C:3 * C].set(wres)
    w1r = w1r.at[DIM_IN:, 3 * C:4 * C].set(wres)
    zc = jnp.zeros((1, C), f32)
    b1r = jnp.concatenate([b1, b1, zc, zc], axis=1)     # residual proj: no bias

    # Temporal projection: (PT, 2*PC), columns = [(sc+1)_A | (sc+1)_B | sh_A | sh_B].
    wt_sc, wt_sh = wt[:, :C], wt[:, C:]
    wtp = jnp.zeros((PT, 2 * PC), f32)
    wtp = wtp.at[:T_DIM, 0 * C:1 * C].set(wt_sc)
    wtp = wtp.at[T_DIM:, 1 * C:2 * C].set(wt_sc)
    wtp = wtp.at[:T_DIM, 2 * C:3 * C].set(wt_sh)
    wtp = wtp.at[T_DIM:, 3 * C:4 * C].set(wt_sh)
    bt_sc, bt_sh = bt[:, :C], bt[:, C:]
    btp = jnp.concatenate([bt_sc + 1.0, bt_sc + 1.0, bt_sh, bt_sh], axis=1)

    # lin2 as block-diagonal (PC, PC): packed rows stay independent.
    w2p = jnp.zeros((PC, PC), f32)
    w2p = w2p.at[:C, :C].set(w2).at[C:, C:].set(w2)
    b2p = jnp.tile(b2, (1, PACK))

    g1p, be1p = jnp.tile(g1, (1, PACK)), jnp.tile(be1, (1, PACK))
    g2p, be2p = jnp.tile(g2, (1, PACK)), jnp.tile(be2, (1, PACK))

    # Merged group-averaging matrix: [h | h*h] @ blockdiag(A, A) = [mean | E[h^2]].
    cg = C // N_GROUPS
    gid = jnp.arange(PC) // cg                 # distinct groups per packed row half
    avg = (gid[:, None] == gid[None, :]).astype(f32) / cg
    avg2 = jnp.zeros((2 * PC, 2 * PC), f32)
    avg2 = avg2.at[:PC, :PC].set(avg).at[PC:, PC:].set(avg)

    # MXU operands in bf16 (f32 accumulate); 1/cg = 0.125 is exact in bf16.
    return (w1r.astype(bf16), b1r, wtp.astype(bf16), btp, w2p.astype(bf16),
            b2p, g1p, be1p, g2p, be2p, avg2.astype(bf16))


@functools.partial(jax.jit, static_argnames=("block_rows", "out_dtype"))
def temporal_resblock(x, t_emb, packed, *, block_rows=2048, out_dtype=jnp.float32):
    """block_rows = packed row-pairs per grid step (each carries 2 batch rows)."""
    b = x.shape[0]

    # Row-pair packing (free contiguous reshapes; pad only if b is odd).
    pad_b = _round_up(b, PACK) - b
    if pad_b:
        x = jnp.pad(x, ((0, pad_b), (0, 0)))
        t_emb = jnp.pad(t_emb, ((0, pad_b), (0, 0)))
    n_pairs = (b + pad_b) // PACK
    xp = x.reshape(n_pairs, PIN)
    tp = t_emb.reshape(n_pairs, PT)

    # Block size: multiple of CHUNK; keep >= 2 grid steps when possible so
    # dimension_semantics=("parallel",) gives both v7x TensorCores work
    # (no-op on single-TC v5e/v6e).
    block_rows = max(CHUNK, min(block_rows, _round_up(n_pairs, CHUNK)))
    if n_pairs >= 2 * CHUNK:
        block_rows = min(block_rows, _round_up(pl.cdiv(n_pairs, 2), CHUNK))
    block_rows = _round_up(block_rows, CHUNK)

    padded_pairs = pl.cdiv(n_pairs, block_rows) * block_rows
    if padded_pairs != n_pairs:     # avoided entirely when block_rows | n_pairs
        xp = jnp.pad(xp, ((0, padded_pairs - n_pairs), (0, 0)))
        tp = jnp.pad(tp, ((0, padded_pairs - n_pairs), (0, 0)))

    out_packed = pl.pallas_call(
        temporal_resblock_kernel,
        out_shape=jax.ShapeDtypeStruct((padded_pairs, PC), out_dtype),
        grid=(padded_pairs // block_rows,),
        in_specs=[pl.BlockSpec((block_rows, PIN), lambda i: (i, 0)),
                  pl.BlockSpec((block_rows, PT), lambda i: (i, 0))]
                 + [pl.BlockSpec(p.shape, lambda i: (0, 0)) for p in packed],
        out_specs=pl.BlockSpec((block_rows, PC), lambda i: (i, 0)),
        compiler_params=pltpu.CompilerParams(
            dimension_semantics=("parallel",)),
    )(xp, tp, *packed)

    out = out_packed.reshape(padded_pairs * PACK, DIM_OUT)   # free reshape
    return out if padded_pairs * PACK == b else out[:b]


# --------------------------- pure-JAX reference -------------------------------
def _group_norm_ref(x, gamma, beta, groups, eps):
    b, c = x.shape
    cg = c // groups
    xg = x.reshape(b, groups, cg)
    mean = jnp.mean(xg, axis=-1, keepdims=True)
    var = jnp.mean((xg - mean) ** 2, axis=-1, keepdims=True)
    xn = ((xg - mean) * jax.lax.rsqrt(var + eps)).reshape(b, c)
    return xn * gamma + beta


def reference(x, t_emb, params):
    (w1, b1, g1, be1, w2, b2, g2, be2, wt, bt, wres) = params
    scale_shift = _silu(t_emb) @ wt + bt
    scale, shift = scale_shift[:, :DIM_OUT], scale_shift[:, DIM_OUT:]
    h = x @ w1 + b1
    h = _group_norm_ref(h, g1, be1, N_GROUPS, EPS)
    h = h * (scale + 1.0) + shift
    h = _silu(h)
    h = h @ w2 + b2
    res = x @ wres
    return _silu(_group_norm_ref(h + res, g2, be2, N_GROUPS, EPS))


# ------------------------------ main ------------------------------------------
if __name__ == "__main__":
    key = jax.random.PRNGKey(0)
    ks = jax.random.split(key, 12)

    def init(k, shape, scale=0.1):
        return scale * jax.random.normal(k, shape, dtype=jnp.float32)

    # Parameters (deterministic synthetic init; shapes follow the module).
    w1 = init(ks[0], (DIM_IN, DIM_OUT))
    b1 = init(ks[1], (1, DIM_OUT))
    g1 = 1.0 + init(ks[2], (1, DIM_OUT))
    be1 = init(ks[3], (1, DIM_OUT))
    w2 = init(ks[4], (DIM_OUT, DIM_OUT))
    b2 = init(ks[5], (1, DIM_OUT))
    g2 = 1.0 + init(ks[6], (1, DIM_OUT))
    be2 = init(ks[7], (1, DIM_OUT))
    wt = init(ks[8], (T_DIM, 2 * DIM_OUT))
    bt = init(ks[9], (1, 2 * DIM_OUT))
    wres = init(ks[10], (DIM_IN, DIM_OUT))
    params = (w1, b1, g1, be1, w2, b2, g2, be2, wt, bt, wres)
    packed = pack_params(params)

    # Small test shapes: B=1024 -> 512 packed row-pairs -> grid of 2 blocks of
    # 256 rows, each running 4 inner 64-row chunks; no padding, no tail slice.
    B = 1024
    kx, kt = jax.random.split(ks[11])
    x = jax.random.normal(kx, (B, DIM_IN), dtype=jnp.float32)
    t_emb = jax.random.normal(kt, (B, T_DIM), dtype=jnp.float32)

    out = jax.block_until_ready(temporal_resblock(x, t_emb, packed))
    ref = jax.block_until_ready(reference(x, t_emb, params))
    # bf16 MXU operands (incl. the GroupNorm-stat matmuls) -> loosened tol;
    # accumulation and all elementwise math are f32.
    np.testing.assert_allclose(np.asarray(out), np.asarray(ref),
                               rtol=5e-2, atol=5e-2)
    print("KERNEL_OK")
</pallas_src>

<mosaic_0001>
module attributes {stable_mosaic.version = 11 : i64} {
  func.func @temporal_resblock_kernel(%arg0: i32, %arg1: memref<256x64xf32, #tpu.memory_space<vmem>>, %arg2: memref<256x32xf32, #tpu.memory_space<vmem>>, %arg3: memref<64x256xbf16, #tpu.memory_space<vmem>>, %arg4: memref<1x256xf32, #tpu.memory_space<vmem>>, %arg5: memref<32x256xbf16, #tpu.memory_space<vmem>>, %arg6: memref<1x256xf32, #tpu.memory_space<vmem>>, %arg7: memref<128x128xbf16, #tpu.memory_space<vmem>>, %arg8: memref<1x128xf32, #tpu.memory_space<vmem>>, %arg9: memref<1x128xf32, #tpu.memory_space<vmem>>, %arg10: memref<1x128xf32, #tpu.memory_space<vmem>>, %arg11: memref<1x128xf32, #tpu.memory_space<vmem>>, %arg12: memref<1x128xf32, #tpu.memory_space<vmem>>, %arg13: memref<256x256xbf16, #tpu.memory_space<vmem>>, %arg14: memref<256x128xf32, #tpu.memory_space<vmem>>) attributes {dimension_semantics = [#tpu.dimension_semantics<parallel>], iteration_bounds = array<i64: 2>, scalar_prefetch = 0 : i64, scratch_operands = 0 : i64, tpu.core_type = #tpu.core_type<tc>, window_params = [{transform_indices = @transform_0, window_bounds = array<i64: 256, 64>}, {transform_indices = @transform_1, window_bounds = array<i64: 256, 32>}, {pipeline_mode = #tpu.pipeline_mode<synchronous>, transform_indices = @transform_2, window_bounds = array<i64: 64, 256>}, {pipeline_mode = #tpu.pipeline_mode<synchronous>, transform_indices = @transform_3, window_bounds = array<i64: 1, 256>}, {pipeline_mode = #tpu.pipeline_mode<synchronous>, transform_indices = @transform_4, window_bounds = array<i64: 32, 256>}, {pipeline_mode = #tpu.pipeline_mode<synchronous>, transform_indices = @transform_5, window_bounds = array<i64: 1, 256>}, {pipeline_mode = #tpu.pipeline_mode<synchronous>, transform_indices = @transform_6, window_bounds = array<i64: 128, 128>}, {pipeline_mode = #tpu.pipeline_mode<synchronous>, transform_indices = @transform_7, window_bounds = array<i64: 1, 128>}, {pipeline_mode = #tpu.pipeline_mode<synchronous>, transform_indices = @transform_8, window_bounds = array<i64: 1, 128>}, {pipeline_mode = #tpu.pipeline_mode<synchronous>, transform_indices = @transform_9, window_bounds = array<i64: 1, 128>}, {pipeline_mode = #tpu.pipeline_mode<synchronous>, transform_indices = @transform_10, window_bounds = array<i64: 1, 128>}, {pipeline_mode = #tpu.pipeline_mode<synchronous>, transform_indices = @transform_11, window_bounds = array<i64: 1, 128>}, {pipeline_mode = #tpu.pipeline_mode<synchronous>, transform_indices = @transform_12, window_bounds = array<i64: 256, 256>}, {transform_indices = @transform_13, window_bounds = array<i64: 256, 128>}]} {
    %c0_i32 = arith.constant 0 : i32
    %c4_i32 = arith.constant 4 : i32
    %0 = arith.addi %c0_i32, %c4_i32 : i32
    %c1_i32 = arith.constant 1 : i32
    scf.for %arg15 = %c0_i32 to %0 step %c1_i32  : i32 {
      %c64_i32 = arith.constant 64 : i32
      %1 = arith.muli %arg15, %c64_i32 : i32
      %2 = tpu.assume_multiple %1, 64 : i32
      %3 = arith.index_cast %2 : i32 to index
      %c0 = arith.constant 0 : index
      %4 = vector.load %arg1[%3, %c0] : memref<256x64xf32, #tpu.memory_space<vmem>>, vector<64x64xf32>
      %5 = arith.index_cast %2 : i32 to index
      %c0_1 = arith.constant 0 : index
      %6 = vector.load %arg2[%5, %c0_1] : memref<256x32xf32, #tpu.memory_space<vmem>>, vector<64x32xf32>
      %7 = arith.truncf %4 : vector<64x64xf32> to vector<64x64xbf16>
      %c0_2 = arith.constant 0 : index
      %c0_3 = arith.constant 0 : index
      %8 = vector.load %arg3[%c0_2, %c0_3] : memref<64x256xbf16, #tpu.memory_space<vmem>>, vector<64x256xbf16>
      %cst = arith.constant dense<0.000000e+00> : vector<64x256xf32>
      %9 = tpu.matmul %7, %8, %cst {dimension_numbers = #tpu.dot_dimension_numbers<[1], [0], [0], [1], [0, 0, 1, 1], [], []>} : vector<64x64xbf16>, vector<64x256xbf16>, vector<64x256xf32> -> vector<64x256xf32>
      %c0_4 = arith.constant 0 : index
      %c0_5 = arith.constant 0 : index
      %10 = vector.load %arg4[%c0_4, %c0_5] : memref<1x256xf32, #tpu.memory_space<vmem>>, vector<1x256xf32>
      %11 = vector.broadcast %10 : vector<1x256xf32> to vector<64x256xf32>
      %12 = arith.addf %9, %11 : vector<64x256xf32>
      %13 = vector.extract_strided_slice %12 {offsets = [0, 0], sizes = [64, 128], strides = [1, 1]} : vector<64x256xf32> to vector<64x128xf32>
      %14 = vector.extract_strided_slice %12 {offsets = [0, 128], sizes = [64, 128], strides = [1, 1]} : vector<64x256xf32> to vector<64x128xf32>
      %15 = arith.negf %6 : vector<64x32xf32>
      %16 = math.exp %15 : vector<64x32xf32>
      %cst_6 = arith.constant 1.000000e+00 : f32
      %17 = vector.broadcast %cst_6 : f32 to vector<64x32xf32>
      %18 = arith.addf %17, %16 : vector<64x32xf32>
      %19 = arith.divf %17, %18 : vector<64x32xf32>
      %20 = arith.mulf %6, %19 : vector<64x32xf32>
      %21 = arith.truncf %20 : vector<64x32xf32> to vector<64x32xbf16>
      %c0_7 = arith.constant 0 : index
      %c0_8 = arith.constant 0 : index
      %22 = vector.load %arg5[%c0_7, %c0_8] : memref<32x256xbf16, #tpu.memory_space<vmem>>, vector<32x256xbf16>
      %cst_9 = arith.constant dense<0.000000e+00> : vector<64x256xf32>
      %23 = tpu.matmul %21, %22, %cst_9 {dimension_numbers = #tpu.dot_dimension_numbers<[1], [0], [0], [1], [0, 0, 1, 1], [], []>} : vector<64x32xbf16>, vector<32x256xbf16>, vector<64x256xf32> -> vector<64x256xf32>
      %c0_10 = arith.constant 0 : index
      %c0_11 = arith.constant 0 : index
      %24 = vector.load %arg6[%c0_10, %c0_11] : memref<1x256xf32, #tpu.memory_space<vmem>>, vector<1x256xf32>
      %25 = vector.broadcast %24 : vector<1x256xf32> to vector<64x256xf32>
      %26 = arith.addf %23, %25 : vector<64x256xf32>
      %27 = vector.extract_strided_slice %26 {offsets = [0, 0], sizes = [64, 128], strides = [1, 1]} : vector<64x256xf32> to vector<64x128xf32>
      %28 = vector.extract_strided_slice %26 {offsets = [0, 128], sizes = [64, 128], strides = [1, 1]} : vector<64x256xf32> to vector<64x128xf32>
      %c0_12 = arith.constant 0 : index
      %c0_13 = arith.constant 0 : index
      %29 = vector.load %arg13[%c0_12, %c0_13] : memref<256x256xbf16, #tpu.memory_space<vmem>>, vector<256x256xbf16>
      %c0_14 = arith.constant 0 : index
      %c0_15 = arith.constant 0 : index
      %30 = vector.load %arg9[%c0_14, %c0_15] : memref<1x128xf32, #tpu.memory_space<vmem>>, vector<1x128xf32>
      %c0_16 = arith.constant 0 : index
      %c0_17 = arith.constant 0 : index
      %31 = vector.load %arg10[%c0_16, %c0_17] : memref<1x128xf32, #tpu.memory_space<vmem>>, vector<1x128xf32>
      %32 = arith.mulf %13, %13 : vector<64x128xf32>
      %33 = tpu.concatenate %13, %32 in 1 : vector<64x128xf32>, vector<64x128xf32> -> vector<64x256xf32>
      %34 = arith.truncf %33 : vector<64x256xf32> to vector<64x256xbf16>
      %cst_18 = arith.constant dense<0.000000e+00> : vector<64x256xf32>
      %35 = tpu.matmul %34, %29, %cst_18 {dimension_numbers = #tpu.dot_dimension_numbers<[1], [0], [0], [1], [0, 0, 1, 1], [], []>} : vector<64x256xbf16>, vector<256x256xbf16>, vector<64x256xf32> -> vector<64x256xf32>
      %36 = vector.extract_strided_slice %35 {offsets = [0, 0], sizes = [64, 128], strides = [1, 1]} : vector<64x256xf32> to vector<64x128xf32>
      %37 = vector.extract_strided_slice %35 {offsets = [0, 128], sizes = [64, 128], strides = [1, 1]} : vector<64x256xf32> to vector<64x128xf32>
      %38 = arith.mulf %36, %36 : vector<64x128xf32>
      %39 = arith.subf %37, %38 : vector<64x128xf32>
      %cst_19 = arith.constant 0.000000e+00 : f32
      %40 = vector.broadcast %cst_19 : f32 to vector<64x128xf32>
      %41 = arith.maximumf %39, %40 : vector<64x128xf32>
      %42 = arith.subf %13, %36 : vector<64x128xf32>
      %cst_20 = arith.constant 9.99999974E-6 : f32
      %43 = vector.broadcast %cst_20 : f32 to vector<64x128xf32>
      %44 = arith.addf %41, %43 : vector<64x128xf32>
      %45 = math.rsqrt %44 : vector<64x128xf32>
      %46 = arith.mulf %42, %45 : vector<64x128xf32>
      %47 = vector.broadcast %30 : vector<1x128xf32> to vector<64x128xf32>
      %48 = arith.mulf %46, %47 : vector<64x128xf32>
      %49 = vector.broadcast %31 : vector<1x128xf32> to vector<64x128xf32>
      %50 = arith.addf %48, %49 : vector<64x128xf32>
      %51 = arith.mulf %50, %27 : vector<64x128xf32>
      %52 = arith.addf %51, %28 : vector<64x128xf32>
      %53 = arith.negf %52 : vector<64x128xf32>
      %54 = math.exp %53 : vector<64x128xf32>
      %cst_21 = arith.constant 1.000000e+00 : f32
      %55 = vector.broadcast %cst_21 : f32 to vector<64x128xf32>
      %56 = arith.addf %55, %54 : vector<64x128xf32>
      %57 = arith.divf %55, %56 : vector<64x128xf32>
      %58 = arith.mulf %52, %57 : vector<64x128xf32>
      %59 = arith.truncf %58 : vector<64x128xf32> to vector<64x128xbf16>
      %c0_22 = arith.constant 0 : index
      %c0_23 = arith.constant 0 : index
      %60 = vector.load %arg7[%c0_22, %c0_23] : memref<128x128xbf16, #tpu.memory_space<vmem>>, vector<128x128xbf16>
      %cst_24 = arith.constant dense<0.000000e+00> : vector<64x128xf32>
      %61 = tpu.matmul %59, %60, %cst_24 {dimension_numbers = #tpu.dot_dimension_numbers<[1], [0], [0], [1], [0, 0, 1, 1], [], []>} : vector<64x128xbf16>, vector<128x128xbf16>, vector<64x128xf32> -> vector<64x128xf32>
      %c0_25 = arith.constant 0 : index
      %c0_26 = arith.constant 0 : index
      %62 = vector.load %arg8[%c0_25, %c0_26] : memref<1x128xf32, #tpu.memory_space<vmem>>, vector<1x128xf32>
      %63 = vector.broadcast %62 : vector<1x128xf32> to vector<64x128xf32>
      %64 = arith.addf %61, %63 : vector<64x128xf32>
      %65 = arith.addf %64, %14 : vector<64x128xf32>
      %c0_27 = arith.constant 0 : index
      %c0_28 = arith.constant 0 : index
      %66 = vector.load %arg13[%c0_27, %c0_28] : memref<256x256xbf16, #tpu.memory_space<vmem>>, vector<256x256xbf16>
      %c0_29 = arith.constant 0 : index
      %c0_30 = arith.constant 0 : index
      %67 = vector.load %arg11[%c0_29, %c0_30] : memref<1x128xf32, #tpu.memory_space<vmem>>, vector<1x128xf32>
      %c0_31 = arith.constant 0 : index
      %c0_32 = arith.constant 0 : index
      %68 = vector.load %arg12[%c0_31, %c0_32] : memref<1x128xf32, #tpu.memory_space<vmem>>, vector<1x128xf32>
      %69 = arith.mulf %65, %65 : vector<64x128xf32>
      %70 = tpu.concatenate %65, %69 in 1 : vector<64x128xf32>, vector<64x128xf32> -> vector<64x256xf32>
      %71 = arith.truncf %70 : vector<64x256xf32> to vector<64x256xbf16>
      %cst_33 = arith.constant dense<0.000000e+00> : vector<64x256xf32>
      %72 = tpu.matmul %71, %66, %cst_33 {dimension_numbers = #tpu.dot_dimension_numbers<[1], [0], [0], [1], [0, 0, 1, 1], [], []>} : vector<64x256xbf16>, vector<256x256xbf16>, vector<64x256xf32> -> vector<64x256xf32>
      %73 = vector.extract_strided_slice %72 {offsets = [0, 0], sizes = [64, 128], strides = [1, 1]} : vector<64x256xf32> to vector<64x128xf32>
      %74 = vector.extract_strided_slice %72 {offsets = [0, 128], sizes = [64, 128], strides = [1, 1]} : vector<64x256xf32> to vector<64x128xf32>
      %75 = arith.mulf %73, %73 : vector<64x128xf32>
      %76 = arith.subf %74, %75 : vector<64x128xf32>
      %cst_34 = arith.constant 0.000000e+00 : f32
      %77 = vector.broadcast %cst_34 : f32 to vector<64x128xf32>
      %78 = arith.maximumf %76, %77 : vector<64x128xf32>
      %79 = arith.subf %65, %73 : vector<64x128xf32>
      %cst_35 = arith.constant 9.99999974E-6 : f32
      %80 = vector.broadcast %cst_35 : f32 to vector<64x128xf32>
      %81 = arith.addf %78, %80 : vector<64x128xf32>
      %82 = math.rsqrt %81 : vector<64x128xf32>
      %83 = arith.mulf %79, %82 : vector<64x128xf32>
      %84 = vector.broadcast %67 : vector<1x128xf32> to vector<64x128xf32>
      %85 = arith.mulf %83, %84 : vector<64x128xf32>
      %86 = vector.broadcast %68 : vector<1x128xf32> to vector<64x128xf32>
      %87 = arith.addf %85, %86 : vector<64x128xf32>
      %88 = arith.negf %87 : vector<64x128xf32>
      %89 = math.exp %88 : vector<64x128xf32>
      %cst_36 = arith.constant 1.000000e+00 : f32
      %90 = vector.broadcast %cst_36 : f32 to vector<64x128xf32>
      %91 = arith.addf %90, %89 : vector<64x128xf32>
      %92 = arith.divf %90, %91 : vector<64x128xf32>
      %93 = arith.mulf %87, %92 : vector<64x128xf32>
      %94 = arith.index_cast %2 : i32 to index
      %c0_37 = arith.constant 0 : index
      %95 = vector.load %arg14[%94, %c0_37] : memref<256x128xf32, #tpu.memory_space<vmem>>, vector<64x128xf32>
      tpu.vector_store %arg14[%94, %c0_37], %93 {strides = array<i32>} : memref<256x128xf32, #tpu.memory_space<vmem>>, vector<64x128xf32>,
    }
    %c4_i32_0 = arith.constant 4 : i32
    return
  }
  func.func @transform_0(%arg0: i32) -> (i32, i32) {
    %c0_i32 = arith.constant 0 : i32
    %c0_i32_0 = arith.constant 0 : i32
    return %arg0, %c0_i32 : i32, i32
  }
  func.func @transform_1(%arg0: i32) -> (i32, i32) {
    %c0_i32 = arith.constant 0 : i32
    %c0_i32_0 = arith.constant 0 : i32
    return %arg0, %c0_i32 : i32, i32
  }
  func.func @transform_2(%arg0: i32) -> (i32, i32) {
    %c0_i32 = arith.constant 0 : i32
    %c0_i32_0 = arith.constant 0 : i32
    %c0_i32_1 = arith.constant 0 : i32
    return %c0_i32, %c0_i32_0 : i32, i32
  }
  func.func @transform_3(%arg0: i32) -> (i32, i32) {
    %c0_i32 = arith.constant 0 : i32
    %c0_i32_0 = arith.constant 0 : i32
    %c0_i32_1 = arith.constant 0 : i32
    return %c0_i32, %c0_i32_0 : i32, i32
  }
  func.func @transform_4(%arg0: i32) -> (i32, i32) {
    %c0_i32 = arith.constant 0 : i32
    %c0_i32_0 = arith.constant 0 : i32
    %c0_i32_1 = arith.constant 0 : i32
    return %c0_i32, %c0_i32_0 : i32, i32
  }
  func.func @transform_5(%arg0: i32) -> (i32, i32) {
    %c0_i32 = arith.constant 0 : i32
    %c0_i32_0 = arith.constant 0 : i32
    %c0_i32_1 = arith.constant 0 : i32
    return %c0_i32, %c0_i32_0 : i32, i32
  }
  func.func @transform_6(%arg0: i32) -> (i32, i32) {
    %c0_i32 = arith.constant 0 : i32
    %c0_i32_0 = arith.constant 0 : i32
    %c0_i32_1 = arith.constant 0 : i32
    return %c0_i32, %c0_i32_0 : i32, i32
  }
  func.func @transform_7(%arg0: i32) -> (i32, i32) {
    %c0_i32 = arith.constant 0 : i32
    %c0_i32_0 = arith.constant 0 : i32
    %c0_i32_1 = arith.constant 0 : i32
    return %c0_i32, %c0_i32_0 : i32, i32
  }
  func.func @transform_8(%arg0: i32) -> (i32, i32) {
    %c0_i32 = arith.constant 0 : i32
    %c0_i32_0 = arith.constant 0 : i32
    %c0_i32_1 = arith.constant 0 : i32
    return %c0_i32, %c0_i32_0 : i32, i32
  }
  func.func @transform_9(%arg0: i32) -> (i32, i32) {
    %c0_i32 = arith.constant 0 : i32
    %c0_i32_0 = arith.constant 0 : i32
    %c0_i32_1 = arith.constant 0 : i32
    return %c0_i32, %c0_i32_0 : i32, i32
  }
  func.func @transform_10(%arg0: i32) -> (i32, i32) {
    %c0_i32 = arith.constant 0 : i32
    %c0_i32_0 = arith.constant 0 : i32
    %c0_i32_1 = arith.constant 0 : i32
    return %c0_i32, %c0_i32_0 : i32, i32
  }
  func.func @transform_11(%arg0: i32) -> (i32, i32) {
    %c0_i32 = arith.constant 0 : i32
    %c0_i32_0 = arith.constant 0 : i32
    %c0_i32_1 = arith.constant 0 : i32
    return %c0_i32, %c0_i32_0 : i32, i32
  }
  func.func @transform_12(%arg0: i32) -> (i32, i32) {
    %c0_i32 = arith.constant 0 : i32
    %c0_i32_0 = arith.constant 0 : i32
    %c0_i32_1 = arith.constant 0 : i32
    return %c0_i32, %c0_i32_0 : i32, i32
  }
  func.func @transform_13(%arg0: i32) -> (i32, i32) {
    %c0_i32 = arith.constant 0 : i32
    %c0_i32_0 = arith.constant 0 : i32
    return %arg0, %c0_i32 : i32, i32
  }
}

</mosaic_0001>

<llo_original>
// kernel: temporal_resblock.1
$region0: #{temporal_resblock.1}
  #allocation0 [shape = 'u32[]', space=smem, size = 0x4, offset = 0x4, fixed_abs, tag = 'smem constant byte address 0x4 - core index']
  #allocation1 [shape = 'u32[144,128]{1,0:T(1,128)}', space=vmem, size = 0x12000, scoped, tag = 'internal scratch']
  %s0 = inlined_call_operand.vmem [shape: f32[512,64], index: 0, kind: input, shape index: {}]
  %s1 = inlined_call_operand.vmem [shape: f32[512,32], index: 1, kind: input, shape index: {}]
  %s2 = inlined_call_operand.vmem [shape: bf16[64,256], index: 2, kind: input, shape index: {}]
  %s3 = inlined_call_operand.vmem [shape: f32[1,256], index: 3, kind: input, shape index: {}]
  %s4 = inlined_call_operand.vmem [shape: bf16[32,256], index: 4, kind: input, shape index: {}]
  %s5 = inlined_call_operand.vmem [shape: f32[1,256], index: 5, kind: input, shape index: {}]
  %s6 = inlined_call_operand.vmem [shape: bf16[128,128], index: 6, kind: input, shape index: {}]
  %s7 = inlined_call_operand.vmem [shape: f32[1,128], index: 7, kind: input, shape index: {}]
  %s8 = inlined_call_operand.vmem [shape: f32[1,128], index: 8, kind: input, shape index: {}]
  %s9 = inlined_call_operand.vmem [shape: f32[1,128], index: 9, kind: input, shape index: {}]
  %s10 = inlined_call_operand.vmem [shape: f32[1,128], index: 10, kind: input, shape index: {}]
  %s11 = inlined_call_operand.vmem [shape: f32[1,128], index: 11, kind: input, shape index: {}]
  %s12 = inlined_call_operand.vmem [shape: bf16[256,256], index: 12, kind: input, shape index: {}]
  %s13 = inlined_call_operand.vmem [shape: f32[512,128], index: 13, kind: output, shape index: {}]
  %s14 = sld [smem:[#allocation0]]
  $region92: #{temporal_resblock.1} parent=0
    _
  %s16 = ssub.s32 1, %s14
  %s17 = scalar_select 0, %s16, %s14
  loop: start=0, step=1, limit=4
  $region2: #{temporal_resblock.1} parent=0 // loop_pre_header
    _
  $region3: #{temporal_resblock.1} parent=0 // loop_header
    %s19 = sphi 0, %s23
    %p20 = scmp.ge.s32.totalorder %s19, 4
    %s29 = sphi 0, %s31
    %s32 = sphi 0, %s29
    %s33 = sphi 0, %s32
    %s49 = sphi 0, %s33
    %s55 = sphi 0, %s57
    %s58 = sphi 0, %s55
    %s59 = sphi 0, %s58
    %s75 = sphi 0, %s59
    %s79 = sphi 0, %s79
    %s81 = sphi 0, %s79
    %s82 = sphi 0, %s81
    %s96 = sphi 0, %s82
    %s100 = sphi 0, %s100
    %s102 = sphi 0, %s100
    %s103 = sphi 0, %s102
    %s117 = sphi 0, %s103
    %s121 = sphi 0, %s121
    %s123 = sphi 0, %s121
    %s124 = sphi 0, %s123
    %s138 = sphi 0, %s124
    %s142 = sphi 0, %s142
    %s144 = sphi 0, %s142
    %s145 = sphi 0, %s144
    %s159 = sphi 0, %s145
    %s163 = sphi 0, %s163
    %s165 = sphi 0, %s163
    %s166 = sphi 0, %s165
    %s180 = sphi 0, %s166
    %s184 = sphi 0, %s184
    %s186 = sphi 0, %s184
    %s187 = sphi 0, %s186
    %s201 = sphi 0, %s187
    %s205 = sphi 0, %s205
    %s207 = sphi 0, %s205
    %s208 = sphi 0, %s207
    %s222 = sphi 0, %s208
    %s226 = sphi 0, %s226
    %s228 = sphi 0, %s226
    %s229 = sphi 0, %s228
    %s243 = sphi 0, %s229
    %s247 = sphi 0, %s247
    %s249 = sphi 0, %s247
    %s250 = sphi 0, %s249
    %s264 = sphi 0, %s250
    %s268 = sphi 0, %s268
    %s270 = sphi 0, %s268
    %s271 = sphi 0, %s270
    %s285 = sphi 0, %s271
    %s289 = sphi 0, %s289
    %s291 = sphi 0, %s289
    %s292 = sphi 0, %s291
    %s306 = sphi 0, %s292
    %s312 = sphi 0, %s314
    %s315 = sphi 0, %s312
    %s316 = sphi 0, %s315
    %s332 = sphi 0, %s316
  $region4: #{temporal_resblock.1} parent=0 // loop_header_branch
    %22 = sbr.rel (%p20) target = $region8
  $region5: #{temporal_resblock.1} parent=0 // loop_body
    %s24 = ssub.s32 %s19, 1
    %s25 = ssub.s32 %s19, 2
    %s26 = sadd.s32 %s19, 1
    %s27 = ssub.s32 %s19, %s26
    %p28 = scmp.eq.s32.totalorder %s27, 0
    %s30 = sadd.s32 %s29, 1
    %s31 = scalar_select %p28, %s29, %s30
    %p34 = pneg %p28
    %p35 = scmp.eq.s32.totalorder %s19, 1
    %p36 = por %p34, %p35
    %p37 = scmp.ne.s32.totalorder %s29, %s32
    %p38 = scmp.eq.s32.totalorder %s19, 0
    %p39 = por %p37, %p38
    %p40 = scmp.ne.s32.totalorder %s29, %s32
    %p41 = scmp.eq.s32.totalorder %s24, 1
    %p42 = por %p40, %p41
    %p43 = scmp.ne.s32.totalorder %s32, %s33
    %p44 = scmp.eq.s32.totalorder %s24, 0
    %p45 = por %p43, %p44
    %p46 = scmp.ne.s32.totalorder %s32, %s33
    %p47 = scmp.eq.s32.totalorder %s25, 1
    %p48 = por %p46, %p47
    %p50 = scmp.ne.s32.totalorder %s33, %s49
    %p51 = scmp.eq.s32.totalorder %s25, 0
    %p52 = por %p50, %p51
    %s53 = ssub.s32 %s19, %s26
    %p54 = scmp.eq.s32.totalorder %s53, 0
    %s56 = sadd.s32 %s55, 1
    %s57 = scalar_select %p54, %s55, %s56
    %p60 = pneg %p54
    %p61 = scmp.eq.s32.totalorder %s19, 1
    %p62 = por %p60, %p61
    %p63 = scmp.ne.s32.totalorder %s55, %s58
    %p64 = scmp.eq.s32.totalorder %s19, 0
    %p65 = por %p63, %p64
    %p66 = scmp.ne.s32.totalorder %s55, %s58
    %p67 = scmp.eq.s32.totalorder %s24, 1
    %p68 = por %p66, %p67
    %p69 = scmp.ne.s32.totalorder %s58, %s59
    %p70 = scmp.eq.s32.totalorder %s24, 0
    %p71 = por %p69, %p70
    %p72 = scmp.ne.s32.totalorder %s58, %s59
    %p73 = scmp.eq.s32.totalorder %s25, 1
    %p74 = por %p72, %p73
    %p76 = scmp.ne.s32.totalorder %s59, %s75
    %p77 = scmp.eq.s32.totalorder %s25, 0
    %p78 = por %p76, %p77
    %s80 = sadd.s32 %s79, 1
    %p83 = scmp.eq.s32.totalorder %s19, 1
    %p84 = scmp.ne.s32.totalorder %s79, %s81
    %p85 = scmp.eq.s32.totalorder %s19, 0
    %p86 = por %p84, %p85
    %p87 = scmp.ne.s32.totalorder %s79, %s81
    %p88 = scmp.eq.s32.totalorder %s24, 1
    %p89 = por %p87, %p88
    %p90 = scmp.ne.s32.totalorder %s81, %s82
    %p91 = scmp.eq.s32.totalorder %s24, 0
    %p92 = por %p90, %p91
    %p93 = scmp.ne.s32.totalorder %s81, %s82
    %p94 = scmp.eq.s32.totalorder %s25, 1
    %p95 = por %p93, %p94
    %p97 = scmp.ne.s32.totalorder %s82, %s96
    %p98 = scmp.eq.s32.totalorder %s25, 0
    %p99 = por %p97, %p98
    %s101 = sadd.s32 %s100, 1
    %p104 = scmp.eq.s32.totalorder %s19, 1
    %p105 = scmp.ne.s32.totalorder %s100, %s102
    %p106 = scmp.eq.s32.totalorder %s19, 0
    %p107 = por %p105, %p106
    %p108 = scmp.ne.s32.totalorder %s100, %s102
    %p109 = scmp.eq.s32.totalorder %s24, 1
    %p110 = por %p108, %p109
    %p111 = scmp.ne.s32.totalorder %s102, %s103
    %p112 = scmp.eq.s32.totalorder %s24, 0
    %p113 = por %p111, %p112
    %p114 = scmp.ne.s32.totalorder %s102, %s103
    %p115 = scmp.eq.s32.totalorder %s25, 1
    %p116 = por %p114, %p115
    %p118 = scmp.ne.s32.totalorder %s103, %s117
    %p119 = scmp.eq.s32.totalorder %s25, 0
    %p120 = por %p118, %p119
    %s122 = sadd.s32 %s121, 1
    %p125 = scmp.eq.s32.totalorder %s19, 1
    %p126 = scmp.ne.s32.totalorder %s121, %s123
    %p127 = scmp.eq.s32.totalorder %s19, 0
    %p128 = por %p126, %p127
    %p129 = scmp.ne.s32.totalorder %s121, %s123
    %p130 = scmp.eq.s32.totalorder %s24, 1
    %p131 = por %p129, %p130
    %p132 = scmp.ne.s32.totalorder %s123, %s124
    %p133 = scmp.eq.s32.totalorder %s24, 0
    %p134 = por %p132, %p133
    %p135 = scmp.ne.s32.totalorder %s123, %s124
    %p136 = scmp.eq.s32.totalorder %s25, 1
    %p137 = por %p135, %p136
    %p139 = scmp.ne.s32.totalorder %s124, %s138
    %p140 = scmp.eq.s32.totalorder %s25, 0
    %p141 = por %p139, %p140
    %s143 = sadd.s32 %s142, 1
    %p146 = scmp.eq.s32.totalorder %s19, 1
    %p147 = scmp.ne.s32.totalorder %s142, %s144
    %p148 = scmp.eq.s32.totalorder %s19, 0
    %p149 = por %p147, %p148
    %p150 = scmp.ne.s32.totalorder %s142, %s144
    %p151 = scmp.eq.s32.totalorder %s24, 1
    %p152 = por %p150, %p151
    %p153 = scmp.ne.s32.totalorder %s144, %s145
    %p154 = scmp.eq.s32.totalorder %s24, 0
    %p155 = por %p153, %p154
    %p156 = scmp.ne.s32.totalorder %s144, %s145
    %p157 = scmp.eq.s32.totalorder %s25, 1
    %p158 = por %p156, %p157
    %p160 = scmp.ne.s32.totalorder %s145, %s159
    %p161 = scmp.eq.s32.totalorder %s25, 0
    %p162 = por %p160, %p161
    %s164 = sadd.s32 %s163, 1
    %p167 = scmp.eq.s32.totalorder %s19, 1
    %p168 = scmp.ne.s32.totalorder %s163, %s165
    %p169 = scmp.eq.s32.totalorder %s19, 0
    %p170 = por %p168, %p169
    %p171 = scmp.ne.s32.totalorder %s163, %s165
    %p172 = scmp.eq.s32.totalorder %s24, 1
    %p173 = por %p171, %p172
    %p174 = scmp.ne.s32.totalorder %s165, %s166
    %p175 = scmp.eq.s32.totalorder %s24, 0
    %p176 = por %p174, %p175
    %p177 = scmp.ne.s32.totalorder %s165, %s166
    %p178 = scmp.eq.s32.totalorder %s25, 1
    %p179 = por %p177, %p178
    %p181 = scmp.ne.s32.totalorder %s166, %s180
    %p182 = scmp.eq.s32.totalorder %s25, 0
    %p183 = por %p181, %p182
    %s185 = sadd.s32 %s184, 1
    %p188 = scmp.eq.s32.totalorder %s19, 1
    %p189 = scmp.ne.s32.totalorder %s184, %s186
    %p190 = scmp.eq.s32.totalorder %s19, 0
    %p191 = por %p189, %p190
    %p192 = scmp.ne.s32.totalorder %s184, %s186
    %p193 = scmp.eq.s32.totalorder %s24, 1
    %p194 = por %p192, %p193
    %p195 = scmp.ne.s32.totalorder %s186, %s187
    %p196 = scmp.eq.s32.totalorder %s24, 0
    %p197 = por %p195, %p196
    %p198 = scmp.ne.s32.totalorder %s186, %s187
    %p199 = scmp.eq.s32.totalorder %s25, 1
    %p200 = por %p198, %p199
    %p202 = scmp.ne.s32.totalorder %s187, %s201
    %p203 = scmp.eq.s32.totalorder %s25, 0
    %p204 = por %p202, %p203
    %s206 = sadd.s32 %s205, 1
    %p209 = scmp.eq.s32.totalorder %s19, 1
    %p210 = scmp.ne.s32.totalorder %s205, %s207
    %p211 = scmp.eq.s32.totalorder %s19, 0
    %p212 = por %p210, %p211
    %p213 = scmp.ne.s32.totalorder %s205, %s207
    %p214 = scmp.eq.s32.totalorder %s24, 1
    %p215 = por %p213, %p214
    %p216 = scmp.ne.s32.totalorder %s207, %s208
    %p217 = scmp.eq.s32.totalorder %s24, 0
    %p218 = por %p216, %p217
    %p219 = scmp.ne.s32.totalorder %s207, %s208
    %p220 = scmp.eq.s32.totalorder %s25, 1
    %p221 = por %p219, %p220
    %p223 = scmp.ne.s32.totalorder %s208, %s222
    %p224 = scmp.eq.s32.totalorder %s25, 0
    %p225 = por %p223, %p224
    %s227 = sadd.s32 %s226, 1
    %p230 = scmp.eq.s32.totalorder %s19, 1
    %p231 = scmp.ne.s32.totalorder %s226, %s228
    %p232 = scmp.eq.s32.totalorder %s19, 0
    %p233 = por %p231, %p232
    %p234 = scmp.ne.s32.totalorder %s226, %s228
    %p235 = scmp.eq.s32.totalorder %s24, 1
    %p236 = por %p234, %p235
    %p237 = scmp.ne.s32.totalorder %s228, %s229
    %p238 = scmp.eq.s32.totalorder %s24, 0
    %p239 = por %p237, %p238
    %p240 = scmp.ne.s32.totalorder %s228, %s229
    %p241 = scmp.eq.s32.totalorder %s25, 1
    %p242 = por %p240, %p241
    %p244 = scmp.ne.s32.totalorder %s229, %s243
    %p245 = scmp.eq.s32.totalorder %s25, 0
    %p246 = por %p244, %p245
    %s248 = sadd.s32 %s247, 1
    %p251 = scmp.eq.s32.totalorder %s19, 1
    %p252 = scmp.ne.s32.totalorder %s247, %s249
    %p253 = scmp.eq.s32.totalorder %s19, 0
    %p254 = por %p252, %p253
    %p255 = scmp.ne.s32.totalorder %s247, %s249
    %p256 = scmp.eq.s32.totalorder %s24, 1
    %p257 = por %p255, %p256
    %p258 = scmp.ne.s32.totalorder %s249, %s250
    %p259 = scmp.eq.s32.totalorder %s24, 0
    %p260 = por %p258, %p259
    %p261 = scmp.ne.s32.totalorder %s249, %s250
    %p262 = scmp.eq.s32.totalorder %s25, 1
    %p263 = por %p261, %p262
    %p265 = scmp.ne.s32.totalorder %s250, %s264
    %p266 = scmp.eq.s32.totalorder %s25, 0
    %p267 = por %p265, %p266
    %s269 = sadd.s32 %s268, 1
    %p272 = scmp.eq.s32.totalorder %s19, 1
    %p273 = scmp.ne.s32.totalorder %s268, %s270
    %p274 = scmp.eq.s32.totalorder %s19, 0
    %p275 = por %p273, %p274
    %p276 = scmp.ne.s32.totalorder %s268, %s270
    %p277 = scmp.eq.s32.totalorder %s24, 1
    %p278 = por %p276, %p277
    %p279 = scmp.ne.s32.totalorder %s270, %s271
    %p280 = scmp.eq.s32.totalorder %s24, 0
    %p281 = por %p279, %p280
    %p282 = scmp.ne.s32.totalorder %s270, %s271
    %p283 = scmp.eq.s32.totalorder %s25, 1
    %p284 = por %p282, %p283
    %p286 = scmp.ne.s32.totalorder %s271, %s285
    %p287 = scmp.eq.s32.totalorder %s25, 0
    %p288 = por %p286, %p287
    %s290 = sadd.s32 %s289, 1
    %p293 = scmp.eq.s32.totalorder %s19, 1
    %p294 = scmp.ne.s32.totalorder %s289, %s291
    %p295 = scmp.eq.s32.totalorder %s19, 0
    %p296 = por %p294, %p295
    %p297 = scmp.ne.s32.totalorder %s289, %s291
    %p298 = scmp.eq.s32.totalorder %s24, 1
    %p299 = por %p297, %p298
    %p300 = scmp.ne.s32.totalorder %s291, %s292
    %p301 = scmp.eq.s32.totalorder %s24, 0
    %p302 = por %p300, %p301
    %p303 = scmp.ne.s32.totalorder %s291, %s292
    %p304 = scmp.eq.s32.totalorder %s25, 1
    %p305 = por %p303, %p304
    %p307 = scmp.ne.s32.totalorder %s292, %s306
    %p308 = scmp.eq.s32.totalorder %s25, 0
    %p309 = por %p307, %p308
    %s310 = ssub.s32 %s19, %s26
    %p311 = scmp.eq.s32.totalorder %s310, 0
    %s313 = sadd.s32 %s312, 1
    %s314 = scalar_select %p311, %s312, %s313
    %p317 = pneg %p311
    %p318 = scmp.eq.s32.totalorder %s19, 1
    %p319 = por %p317, %p318
    %p320 = scmp.ne.s32.totalorder %s312, %s315
    %p321 = scmp.eq.s32.totalorder %s19, 0
    %p322 = por %p320, %p321
    %p323 = scmp.ne.s32.totalorder %s312, %s315
    %p324 = scmp.eq.s32.totalorder %s24, 1
    %p325 = por %p323, %p324
    %p326 = scmp.ne.s32.totalorder %s315, %s316
    %p327 = scmp.eq.s32.totalorder %s24, 0
    %p328 = por %p326, %p327
    %p329 = scmp.ne.s32.totalorder %s315, %s316
    %p330 = scmp.eq.s32.totalorder %s25, 1
    %p331 = por %p329, %p330
    %p333 = scmp.ne.s32.totalorder %s316, %s332
    %p334 = scmp.eq.s32.totalorder %s25, 0
    %p335 = por %p333, %p334
    %p336 = scmp.le.s32.totalorder 1, %s19
    %p337 = scmp.lt.s32.totalorder %s19, 3
    %p338 = pnand %p336, %p337
    %p339 = pneg %p338
    // Predicated region
    $region9: #{temporal_resblock.1} parent=5 // pred_check
      _
    $region10: #{temporal_resblock.1} parent=5 // pred_check_branch
      %341 = sbr.rel (%p338) target = $region12
    $region11: #{temporal_resblock.1} parent=5 // pred_region
      %s342 = ssub.s32 %s19, 1
      // Predicated region
      $region13: #{temporal_resblock.1} parent=11 // pred_check
        %p343 = pneg %p92
      $region14: #{temporal_resblock.1} parent=11 // pred_check_branch
        %345 = sbr.rel (%p343) target = $region16
      $region15: #{temporal_resblock.1} parent=11 // pred_region
        _
      $region16: #{temporal_resblock.1} parent=11 // pred_fallthru
        _
      // Predicated region
      $region17: #{temporal_resblock.1} parent=11 // pred_check
        %p346 = pneg %p113
      $region18: #{temporal_resblock.1} parent=11 // pred_check_branch
        %348 = sbr.rel (%p346) target = $region20
      $region19: #{temporal_resblock.1} parent=11 // pred_region
        _
      $region20: #{temporal_resblock.1} parent=11 // pred_fallthru
        _
      // Predicated region
      $region21: #{temporal_resblock.1} parent=11 // pred_check
        %p349 = pneg %p134
      $region22: #{temporal_resblock.1} parent=11 // pred_check_branch
        %351 = sbr.rel (%p349) target = $region24
      $region23: #{temporal_resblock.1} parent=11 // pred_region
        _
      $region24: #{temporal_resblock.1} parent=11 // pred_fallthru
        _
      // Predicated region
      $region25: #{temporal_resblock.1} parent=11 // pred_check
        %p352 = pneg %p155
      $region26: #{temporal_resblock.1} parent=11 // pred_check_branch
        %354 = sbr.rel (%p352) target = $region28
      $region27: #{temporal_resblock.1} parent=11 // pred_region
        _
      $region28: #{temporal_resblock.1} parent=11 // pred_fallthru
        _
      // Predicated region
      $region29: #{temporal_resblock.1} parent=11 // pred_check
        %p355 = pneg %p176
      $region30: #{temporal_resblock.1} parent=11 // pred_check_branch
        %357 = sbr.rel (%p355) target = $region32
      $region31: #{temporal_resblock.1} parent=11 // pred_region
        _
      $region32: #{temporal_resblock.1} parent=11 // pred_fallthru
        _
      // Predicated region
      $region33: #{temporal_resblock.1} parent=11 // pred_check
        %p358 = pneg %p197
      $region34: #{temporal_resblock.1} parent=11 // pred_check_branch
        %360 = sbr.rel (%p358) target = $region36
      $region35: #{temporal_resblock.1} parent=11 // pred_region
        _
      $region36: #{temporal_resblock.1} parent=11 // pred_fallthru
        _
      // Predicated region
      $region37: #{temporal_resblock.1} parent=11 // pred_check
        %p361 = pneg %p218
      $region38: #{temporal_resblock.1} parent=11 // pred_check_branch
        %363 = sbr.rel (%p361) target = $region40
      $region39: #{temporal_resblock.1} parent=11 // pred_region
        _
      $region40: #{temporal_resblock.1} parent=11 // pred_fallthru
        _
      // Predicated region
      $region41: #{temporal_resblock.1} parent=11 // pred_check
        %p364 = pneg %p239
      $region42: #{temporal_resblock.1} parent=11 // pred_check_branch
        %366 = sbr.rel (%p364) target = $region44
      $region43: #{temporal_resblock.1} parent=11 // pred_region
        _
      $region44: #{temporal_resblock.1} parent=11 // pred_fallthru
        _
      // Predicated region
      $region45: #{temporal_resblock.1} parent=11 // pred_check
        %p367 = pneg %p260
      $region46: #{temporal_resblock.1} parent=11 // pred_check_branch
        %369 = sbr.rel (%p367) target = $region48
      $region47: #{temporal_resblock.1} parent=11 // pred_region
        _
      $region48: #{temporal_resblock.1} parent=11 // pred_fallthru
        _
      // Predicated region
      $region49: #{temporal_resblock.1} parent=11 // pred_check
        %p370 = pneg %p281
      $region50: #{temporal_resblock.1} parent=11 // pred_check_branch
        %372 = sbr.rel (%p370) target = $region52
      $region51: #{temporal_resblock.1} parent=11 // pred_region
        _
      $region52: #{temporal_resblock.1} parent=11 // pred_fallthru
        _
      // Predicated region
      $region53: #{temporal_resblock.1} parent=11 // pred_check
        %p373 = pneg %p302
      $region54: #{temporal_resblock.1} parent=11 // pred_check_branch
        %375 = sbr.rel (%p373) target = $region56
      $region55: #{temporal_resblock.1} parent=11 // pred_region
        _
      $region56: #{temporal_resblock.1} parent=11 // pred_fallthru
        _
    $region12: #{temporal_resblock.1} parent=5 // pred_fallthru
      _
    %p376 = scmp.lt.s32.totalorder %s19, 2
    // Predicated region
    $region57: #{temporal_resblock.1} parent=5 // pred_check
      %p377 = pneg %p376
    $region58: #{temporal_resblock.1} parent=5 // pred_check_branch
      %379 = sbr.rel (%p377) target = $region60
    $region59: #{temporal_resblock.1} parent=5 // pred_region
      // Predicated region
      $region61: #{temporal_resblock.1} parent=59 // pred_check
        %p380 = pneg %p39
      $region62: #{temporal_resblock.1} parent=59 // pred_check_branch
        %382 = sbr.rel (%p380) target = $region64
      $region63: #{temporal_resblock.1} parent=59 // pred_region
        %s383 = smul.u32 32, %s19
        %p384 = scmp.lt.s32.totalorder %s383, 63
        %s385 = scalar_select %p384, %s383, 63
        %s386 = smul.addr %s385, 8
        %s387 = scalar_lea.vmem %s0, %s386
        %s388 = smul.u32 32, %s19
      $region64: #{temporal_resblock.1} parent=59 // pred_fallthru
        _
      // Predicated region
      $region65: #{temporal_resblock.1} parent=59 // pred_check
        %p389 = pneg %p65
      $region66: #{temporal_resblock.1} parent=59 // pred_check_branch
        %391 = sbr.rel (%p389) target = $region68
      $region67: #{temporal_resblock.1} parent=59 // pred_region
        %s392 = smul.u32 32, %s19
        %p393 = scmp.lt.s32.totalorder %s392, 63
        %s394 = scalar_select %p393, %s392, 63
        %s395 = smul.addr %s394, 8
        %s396 = scalar_lea.vmem %s1, %s395
        %s397 = smul.u32 32, %s19
      $region68: #{temporal_resblock.1} parent=59 // pred_fallthru
        _
    $region60: #{temporal_resblock.1} parent=5 // pred_fallthru
      _
    %p398 = scmp.le.s32.totalorder 1, %s19
    %p399 = scmp.lt.s32.totalorder %s19, 3
    %p400 = pnand %p398, %p399
    %p401 = pneg %p400
    // Predicated region
    $region69: #{temporal_resblock.1} parent=5 // pred_check
      _
    $region70: #{temporal_resblock.1} parent=5 // pred_check_branch
      %403 = sbr.rel (%p400) target = $region72
    $region71: #{temporal_resblock.1} parent=5 // pred_region
      %s404 = ssub.s32 %s19, 1
      %s405 = smul.u32 32, %s24
      %p406 = scmp.lt.s32.totalorder %s405, 63
      %s407 = scalar_select %p406, %s405, 63
      %s408 = smul.addr %s407, 8
      %s409 = scalar_lea.vmem %s0, %s408
      %p410 = pneg %p45
      %p411 = pneg %p42
      %s412 = smul.u32 32, %s24
      %p413 = scmp.lt.s32.totalorder %s412, 63
      %s414 = scalar_select %p413, %s412, 63
      %s415 = smul.addr %s414, 8
      %s416 = scalar_lea.vmem %s1, %s415
      %p417 = pneg %p71
      %p418 = pneg %p68
      %p419 = pneg %p92
      %p420 = pneg %p89
      %p421 = pneg %p113
      %p422 = pneg %p110
      %p423 = pneg %p134
      %p424 = pneg %p131
      %p425 = pneg %p155
      %p426 = pneg %p152
      %p427 = pneg %p176
      %p428 = pneg %p173
      %p429 = pneg %p197
      %p430 = pneg %p194
      %p431 = pneg %p218
      %p432 = pneg %p215
      %p433 = pneg %p239
      %p434 = pneg %p236
      %p435 = pneg %p260
      %p436 = pneg %p257
      %p437 = pneg %p281
      %p438 = pneg %p278
      %p439 = pneg %p302
      %p440 = pneg %p299
      %p441 = pneg %p328
      %p442 = pneg %p325
      %s443 = smul.u32 32, %s24
      %p444 = scmp.lt.s32.totalorder %s443, 63
      %s445 = scalar_select %p444, %s443, 63
      %s446 = smul.addr %s445, 8
      %s447 = scalar_lea.vmem %s13, %s446
      %s448 = smul.u32 32, %s24
      %p449 = scmp.lt.s32.totalorder %s448, 63
      %s450 = scalar_select %p449, %s448, 63
      %s451 = smul.addr %s450, 8
      %s452 = scalar_lea.vmem %s0, %s451
      %s453 = smul.u32 32, %s24
      %s454 = smul.u32 32, %s24
      %p455 = scmp.lt.s32.totalorder %s454, 63
      %s456 = scalar_select %p455, %s454, 63
      %s457 = smul.addr %s456, 8
      %s458 = scalar_lea.vmem %s1, %s457
      %s459 = smul.u32 32, %s24
      %s460 = smul.u32 32, %s24
      %p461 = scmp.lt.s32.totalorder %s460, 63
      %s462 = scalar_select %p461, %s460, 63
      %s463 = smul.addr %s462, 8
      %s464 = scalar_lea.vmem %s13, %s463
      %s465 = smul.u32 32, %s24
      loop: start=0, step=1, limit=4
      $region73: #{temporal_resblock.1} parent=71 // loop_pre_header
        _
      $region74: #{temporal_resblock.1} parent=71 // loop_header
        %s468 = sphi 0, %s472
        %p469 = scmp.ge.s32.totalorder %s468, 4
      $region75: #{temporal_resblock.1} parent=71 // loop_header_branch
        %471 = sbr.rel (%p469) target = $region79
      $region76: #{temporal_resblock.1} parent=71 // loop_body
        %s473 = smul.u32 %s468, 64
        %s474 = scalar_lea.vmem %s452, %s473
        %v475 = vld [vmem:[%s474] sm:$0xff]
        %v476 = vld [vmem:[%s474 + $0x8] sm:$0xff]
        %v477 = vld [vmem:[%s474 + $0x10] sm:$0xff]
        %v478 = vld [vmem:[%s474 + $0x18] sm:$0xff]
        %v479 = vld [vmem:[%s474 + $0x20] sm:$0xff]
        %v480 = vld [vmem:[%s474 + $0x28] sm:$0xff]
        %v481 = vld [vmem:[%s474 + $0x30] sm:$0xff]
        %v482 = vld [vmem:[%s474 + $0x38] sm:$0xff]
        %s483 = scalar_lea.vmem %s458, %s473
        %v484 = vld [vmem:[%s483] sm:$0xff]
        %v485 = vld [vmem:[%s483 + $0x8] sm:$0xff]
        %v486 = vld [vmem:[%s483 + $0x10] sm:$0xff]
        %v487 = vld [vmem:[%s483 + $0x18] sm:$0xff]
        %v488 = vld [vmem:[%s483 + $0x20] sm:$0xff]
        %v489 = vld [vmem:[%s483 + $0x28] sm:$0xff]
        %v490 = vld [vmem:[%s483 + $0x30] sm:$0xff]
        %v491 = vld [vmem:[%s483 + $0x38] sm:$0xff]
        %v492 = vpack.c.bf16 %v476, %v475
        %v493 = vpack.c.bf16 %v478, %v477
        %v494 = vpack.c.bf16 %v480, %v479
        %v495 = vpack.c.bf16 %v482, %v481
        %v496 = vld [vmem:[%s2] sm:$0xff]
        %v497 = vld [vmem:[%s2 + $0x8] sm:$0xff]
        %v498 = vld [vmem:[%s2 + $0x10] sm:$0xff]
        %v499 = vld [vmem:[%s2 + $0x18] sm:$0xff]
        %v500 = vld [vmem:[%s2 + $0x20] sm:$0xff]
        %v501 = vld [vmem:[%s2 + $0x28] sm:$0xff]
        %v502 = vld [vmem:[%s2 + $0x30] sm:$0xff]
        %v503 = vld [vmem:[%s2 + $0x38] sm:$0xff]
        %v504 = vld [vmem:[%s3] sm:$0x3]
        %v506 = vlaneseq
        %v507 = vshrl.u32 %v506, 7
        %v508 = vsub.s32 0, %v507
        %v509 = vrot.slane %v504, %v508
        %v510 = vlaneseq
        %v511 = vshrl.u32 %v510, 7
        %v512 = vsub.s32 1, %v511
        %v513 = vrot.slane %v504, %v512
        %v524 = vunpack.c.l.b16 %v496
        %v525 = vunpack.c.h.b16 %v496
        %v526 = vunpack.c.l.b16 %v497
        %v527 = vunpack.c.h.b16 %v497
        %v528 = vunpack.c.l.b16 %v498
        %v529 = vunpack.c.h.b16 %v498
        %v530 = vunpack.c.l.b16 %v499
        %v531 = vunpack.c.h.b16 %v499
        %v532 = vunpack.c.l.b16 %v500
        %v533 = vunpack.c.h.b16 %v500
        %v534 = vunpack.c.l.b16 %v501
        %v535 = vunpack.c.h.b16 %v501
        %v536 = vunpack.c.l.b16 %v502
        %v537 = vunpack.c.h.b16 %v502
        %v538 = vunpack.c.l.b16 %v503
        %v539 = vunpack.c.h.b16 %v503
        %v540 = vpack.c.b16 %v526, %v524
        %v541 = vpack.c.b16 %v527, %v525
        %v542 = vpack.c.b16 %v530, %v528
        %v543 = vpack.c.b16 %v531, %v529
        %v544 = vpack.c.b16 %v534, %v532
        %v545 = vpack.c.b16 %v535, %v533
        %v546 = vpack.c.b16 %v538, %v536
        %v547 = vpack.c.b16 %v539, %v537
        %vm556 = vcmask 523264
        %v558 = vsel %vm556, %v492, 0
        %v561 = vsel %vm556, %v493, 0
        %v564 = vsel %vm556, %v494, 0
        %v567 = vsel %vm556, %v495, 0
        %569 = vmatprep.subr.bf16.mxu0 %v541
        %570 = vmatpush1.bf16.msra.mxu0 %v540
        %571 = vmatprep.subr.bf16.mxu0 %v543
        %572 = vmatpush1.bf16.msra.mxu0 %v542
        %573 = vmatprep.subr.bf16.mxu0 %v545
        %574 = vmatpush1.bf16.msra.mxu0 %v544
        %575 = vmatprep.subr.bf16.mxu0 %v547
        %576 = vmatpush1.bf16.msra.mxu0 %v546
        %577 = vmatprep.subr.bf16.mxu0 0
        %578 = vmatpush1.bf16.msra.mxu0 0
        %579 = vmatprep.subr.bf16.mxu0 0
        %580 = vmatpush1.bf16.msra.mxu0 0
        %581 = vmatprep.subr.bf16.mxu0 0
        %582 = vmatpush1.bf16.msra.mxu0 0
        %583 = vmatprep.subr.bf16.mxu0 0
        %584 = vmatpush1.bf16.msra.mxu0 0
        %585 = vmatprep.subr.bf16.mxu0 0
        %586 = vmatpush1.bf16.msra.mxu0 0
        %587 = vmatprep.subr.bf16.mxu0 0
        %588 = vmatpush1.bf16.msra.mxu0 0
        %589 = vmatprep.subr.bf16.mxu0 0
        %590 = vmatpush1.bf16.msra.mxu0 0
        %591 = vmatprep.subr.bf16.mxu0 0
        %592 = vmatpush1.bf16.msra.mxu0 0
        %593 = vmatprep.subr.bf16.mxu0 0
        %594 = vmatpush1.bf16.msra.mxu0 0
        %595 = vmatprep.subr.bf16.mxu0 0
        %596 = vmatpush1.bf16.msra.mxu0 0
        %597 = vmatprep.subr.bf16.mxu0 0
        %598 = vmatpush1.bf16.msra.mxu0 0
        %599 = vmatprep.subr.bf16.mxu0 0
        %600 = vmatpush1.bf16.msra.mxu0 0
        %601 = vmatprep.mubr.bf16.mxu0 0
        %602 = vmatmul.mubr.bf16.gmra.mrb[0].mxu0 %v558
        %v603 = vpop.f32.mrb[0].mxu0
        %v604 = vadd.f32 %v509, %v603
        %v605 = vpop.f32.mrb[0].mxu0
        %v606 = vadd.f32 %v513, %v605
        %v607 = vpop.f32.mrb[0].mxu0
        %v608 = vadd.f32 %v509, %v607
        %v609 = vpop.f32.mrb[0].mxu0
        %v610 = vadd.f32 %v513, %v609
        %611 = vmatprep.mubr.bf16.mxu0 0
        %612 = vmatmul.mubr.bf16.gmra.mrb[0].mxu0 %v561
        %v613 = vpop.f32.mrb[0].mxu0
        %v614 = vadd.f32 %v509, %v613
        %v615 = vpop.f32.mrb[0].mxu0
        %v616 = vadd.f32 %v513, %v615
        %v617 = vpop.f32.mrb[0].mxu0
        %v618 = vadd.f32 %v509, %v617
        %v619 = vpop.f32.mrb[0].mxu0
        %v620 = vadd.f32 %v513, %v619
        %621 = vmatprep.mubr.bf16.mxu0 0
        %622 = vmatmul.mubr.bf16.gmra.mrb[0].mxu0 %v564
        %v623 = vpop.f32.mrb[0].mxu0
        %v624 = vadd.f32 %v509, %v623
        %v625 = vpop.f32.mrb[0].mxu0
        %v626 = vadd.f32 %v513, %v625
        %v627 = vpop.f32.mrb[0].mxu0
        %v628 = vadd.f32 %v509, %v627
        %v629 = vpop.f32.mrb[0].mxu0
        %v630 = vadd.f32 %v513, %v629
        %631 = vmatprep.mubr.bf16.mxu0 0
        %632 = vmatmul.mubr.bf16.gmra.mrb[0].mxu0 %v567
        %v633 = vpop.f32.mrb[0].mxu0
        %v634 = vadd.f32 %v509, %v633
        %v635 = vpop.f32.mrb[0].mxu0
        %v636 = vadd.f32 %v513, %v635
        %v637 = vpop.f32.mrb[0].mxu0
        %v638 = vadd.f32 %v509, %v637
        %v639 = vpop.f32.mrb[0].mxu0
        %v640 = vadd.f32 %v513, %v639
        %641 = vdwg.mxu0
        %v642 = vxor.u32 %v484, 2147483648
        %v643 = vxor.u32 %v485, 2147483648
        %v644 = vxor.u32 %v486, 2147483648
        %v645 = vxor.u32 %v487, 2147483648
        %v646 = vxor.u32 %v488, 2147483648
        %v647 = vxor.u32 %v489, 2147483648
        %v648 = vxor.u32 %v490, 2147483648
        %v649 = vxor.u32 %v491, 2147483648
        %v650 = vmul.f32 %v642, 1.442695
        %v651 = vpow.pop %v650
        %v652 = vmul.f32 %v643, 1.442695
        %v653 = vpow.pop %v652
        %v654 = vmul.f32 %v644, 1.442695
        %v655 = vpow.pop %v654
        %v656 = vmul.f32 %v645, 1.442695
        %v657 = vpow.pop %v656
        %v658 = vmul.f32 %v646, 1.442695
        %v659 = vpow.pop %v658
        %v660 = vmul.f32 %v647, 1.442695
        %v661 = vpow.pop %v660
        %v662 = vmul.f32 %v648, 1.442695
        %v663 = vpow.pop %v662
        %v664 = vmul.f32 %v649, 1.442695
        %v665 = vpow.pop %v664
        %v666 = vadd.f32 %v651, 1.0
        %v667 = vadd.f32 %v653, 1.0
        %v668 = vadd.f32 %v655, 1.0
        %v669 = vadd.f32 %v657, 1.0
        %v670 = vadd.f32 %v659, 1.0
        %v671 = vadd.f32 %v661, 1.0
        %v672 = vadd.f32 %v663, 1.0
        %v673 = vadd.f32 %v665, 1.0
        %v674 = vrcp.pop %v666
        %v675 = vmul.f32 1.0, %v674
        %v676 = vrcp.pop %v667
        %v677 = vmul.f32 1.0, %v676
        %v678 = vrcp.pop %v668
        %v679 = vmul.f32 1.0, %v678
        %v680 = vrcp.pop %v669
        %v681 = vmul.f32 1.0, %v680
        %v682 = vrcp.pop %v670
        %v683 = vmul.f32 1.0, %v682
        %v684 = vrcp.pop %v671
        %v685 = vmul.f32 1.0, %v684
        %v686 = vrcp.pop %v672
        %v687 = vmul.f32 1.0, %v686
        %v688 = vrcp.pop %v673
        %v689 = vmul.f32 1.0, %v688
        %v690 = vmul.f32 %v484, %v675
        %v691 = vmul.f32 %v485, %v677
        %v692 = vmul.f32 %v486, %v679
        %v693 = vmul.f32 %v487, %v681
        %v694 = vmul.f32 %v488, %v683
        %v695 = vmul.f32 %v489, %v685
        %v696 = vmul.f32 %v490, %v687
        %v697 = vmul.f32 %v491, %v689
        %v698 = vpack.c.bf16 %v691, %v690
        %v699 = vpack.c.bf16 %v693, %v692
        %v700 = vpack.c.bf16 %v695, %v694
        %v701 = vpack.c.bf16 %v697, %v696
        %v702 = vld [vmem:[%s4] sm:$0xff]
        %v703 = vld [vmem:[%s4 + $0x8] sm:$0xff]
        %v704 = vld [vmem:[%s4 + $0x10] sm:$0xff]
        %v705 = vld [vmem:[%s4 + $0x18] sm:$0xff]
        %v706 = vld [vmem:[%s5] sm:$0x3]
        %v708 = vlaneseq
        %v709 = vshrl.u32 %v708, 7
        %v710 = vsub.s32 0, %v709
        %v711 = vrot.slane %v706, %v710
        %v712 = vlaneseq
        %v713 = vshrl.u32 %v712, 7
        %v714 = vsub.s32 1, %v713
        %v715 = vrot.slane %v706, %v714
        %v722 = vunpack.c.l.b16 %v702
        %v723 = vunpack.c.h.b16 %v702
        %v724 = vunpack.c.l.b16 %v703
        %v725 = vunpack.c.h.b16 %v703
        %v726 = vunpack.c.l.b16 %v704
        %v727 = vunpack.c.h.b16 %v704
        %v728 = vunpack.c.l.b16 %v705
        %v729 = vunpack.c.h.b16 %v705
        %v730 = vpack.c.b16 %v724, %v722
        %v731 = vpack.c.b16 %v725, %v723
        %v732 = vpack.c.b16 %v728, %v726
        %v733 = vpack.c.b16 %v729, %v727
        %vm738 = vcmask 261120
        %v740 = vsel %vm738, %v698, 0
        %v743 = vsel %vm738, %v699, 0
        %v746 = vsel %vm738, %v700, 0
        %v749 = vsel %vm738, %v701, 0
        %751 = vmatprep.subr.bf16.mxu0 %v731
        %752 = vmatpush1.bf16.msra.mxu0 %v730
        %753 = vmatprep.subr.bf16.mxu0 %v733
        %754 = vmatpush1.bf16.msra.mxu0 %v732
        %755 = vmatprep.subr.bf16.mxu0 0
        %756 = vmatpush1.bf16.msra.mxu0 0
        %757 = vmatprep.subr.bf16.mxu0 0
        %758 = vmatpush1.bf16.msra.mxu0 0
        %759 = vmatprep.subr.bf16.mxu0 0
        %760 = vmatpush1.bf16.msra.mxu0 0
        %761 = vmatprep.subr.bf16.mxu0 0
        %762 = vmatpush1.bf16.msra.mxu0 0
        %763 = vmatprep.subr.bf16.mxu0 0
        %764 = vmatpush1.bf16.msra.mxu0 0
        %765 = vmatprep.subr.bf16.mxu0 0
        %766 = vmatpush1.bf16.msra.mxu0 0
        %767 = vmatprep.subr.bf16.mxu0 0
        %768 = vmatpush1.bf16.msra.mxu0 0
        %769 = vmatprep.subr.bf16.mxu0 0
        %770 = vmatpush1.bf16.msra.mxu0 0
        %771 = vmatprep.subr.bf16.mxu0 0
        %772 = vmatpush1.bf16.msra.mxu0 0
        %773 = vmatprep.subr.bf16.mxu0 0
        %774 = vmatpush1.bf16.msra.mxu0 0
        %775 = vmatprep.subr.bf16.mxu0 0
        %776 = vmatpush1.bf16.msra.mxu0 0
        %777 = vmatprep.subr.bf16.mxu0 0
        %778 = vmatpush1.bf16.msra.mxu0 0
        %779 = vmatprep.subr.bf16.mxu0 0
        %780 = vmatpush1.bf16.msra.mxu0 0
        %781 = vmatprep.subr.bf16.mxu0 0
        %782 = vmatpush1.bf16.msra.mxu0 0
        %783 = vmatprep.mubr.bf16.mxu0 0
        %784 = vmatmul.mubr.bf16.gmra.mrb[0].mxu0 %v740
        %v785 = vpop.f32.mrb[0].mxu0
        %v786 = vadd.f32 %v711, %v785
        %v787 = vpop.f32.mrb[0].mxu0
        %v788 = vadd.f32 %v715, %v787
        %v789 = vpop.f32.mrb[0].mxu0
        %v790 = vadd.f32 %v711, %v789
        %v791 = vpop.f32.mrb[0].mxu0
        %v792 = vadd.f32 %v715, %v791
        %793 = vmatprep.mubr.bf16.mxu0 0
        %794 = vmatmul.mubr.bf16.gmra.mrb[0].mxu0 %v743
        %v795 = vpop.f32.mrb[0].mxu0
        %v796 = vadd.f32 %v711, %v795
        %v797 = vpop.f32.mrb[0].mxu0
        %v798 = vadd.f32 %v715, %v797
        %v799 = vpop.f32.mrb[0].mxu0
        %v800 = vadd.f32 %v711, %v799
        %v801 = vpop.f32.mrb[0].mxu0
        %v802 = vadd.f32 %v715, %v801
        %803 = vmatprep.mubr.bf16.mxu0 0
        %804 = vmatmul.mubr.bf16.gmra.mrb[0].mxu0 %v746
        %v805 = vpop.f32.mrb[0].mxu0
        %v806 = vadd.f32 %v711, %v805
        %v807 = vpop.f32.mrb[0].mxu0
        %v808 = vadd.f32 %v715, %v807
        %v809 = vpop.f32.mrb[0].mxu0
        %v810 = vadd.f32 %v711, %v809
        %v811 = vpop.f32.mrb[0].mxu0
        %v812 = vadd.f32 %v715, %v811
        %813 = vmatprep.mubr.bf16.mxu0 0
        %814 = vmatmul.mubr.bf16.gmra.mrb[0].mxu0 %v749
        %v815 = vpop.f32.mrb[0].mxu0
        %v816 = vadd.f32 %v711, %v815
        %v817 = vpop.f32.mrb[0].mxu0
        %v818 = vadd.f32 %v715, %v817
        %v819 = vpop.f32.mrb[0].mxu0
        %v820 = vadd.f32 %v711, %v819
        %v821 = vpop.f32.mrb[0].mxu0
        %v822 = vadd.f32 %v715, %v821
        %823 = vdwg.mxu0
        %v824 = vld [vmem:[%s12] sm:$0xff]
        %v825 = vld [vmem:[%s12 + $0x8] sm:$0xff]
        %v826 = vld [vmem:[%s12 + $0x10] sm:$0xff]
        %v827 = vld [vmem:[%s12 + $0x18] sm:$0xff]
        %v828 = vld [vmem:[%s12 + $0x20] sm:$0xff]
        %v829 = vld [vmem:[%s12 + $0x28] sm:$0xff]
        %v830 = vld [vmem:[%s12 + $0x30] sm:$0xff]
        %v831 = vld [vmem:[%s12 + $0x38] sm:$0xff]
        %v832 = vld [vmem:[%s12 + $0x40] sm:$0xff]
        %v833 = vld [vmem:[%s12 + $0x48] sm:$0xff]
        %v834 = vld [vmem:[%s12 + $0x50] sm:$0xff]
        %v835 = vld [vmem:[%s12 + $0x58] sm:$0xff]
        %v836 = vld [vmem:[%s12 + $0x60] sm:$0xff]
        %v837 = vld [vmem:[%s12 + $0x68] sm:$0xff]
        %v838 = vld [vmem:[%s12 + $0x70] sm:$0xff]
        %v839 = vld [vmem:[%s12 + $0x78] sm:$0xff]
        %v840 = vld [vmem:[%s12 + $0x80] sm:$0xff]
        %v841 = vld [vmem:[%s12 + $0x88] sm:$0xff]
        %v842 = vld [vmem:[%s12 + $0x90] sm:$0xff]
        %v843 = vld [vmem:[%s12 + $0x98] sm:$0xff]
        %v844 = vld [vmem:[%s12 + $0xa0] sm:$0xff]
        %v845 = vld [vmem:[%s12 + $0xa8] sm:$0xff]
        %v846 = vld [vmem:[%s12 + $0xb0] sm:$0xff]
        %v847 = vld [vmem:[%s12 + $0xb8] sm:$0xff]
        %v848 = vld [vmem:[%s12 + $0xc0] sm:$0xff]
        %v849 = vld [vmem:[%s12 + $0xc8] sm:$0xff]
        %v850 = vld [vmem:[%s12 + $0xd0] sm:$0xff]
        %v851 = vld [vmem:[%s12 + $0xd8] sm:$0xff]
        %v852 = vld [vmem:[%s12 + $0xe0] sm:$0xff]
        %v853 = vld [vmem:[%s12 + $0xe8] sm:$0xff]
        %v854 = vld [vmem:[%s12 + $0xf0] sm:$0xff]
        %v855 = vld [vmem:[%s12 + $0xf8] sm:$0xff]
        %v856 = vld [vmem:[%s8] sm:$0x1]
        %v857 = vld [vmem:[%s9] sm:$0x1]
        %v858 = vmul.f32 %v604, %v604
        %v859 = vmul.f32 %v608, %v608
        %v860 = vmul.f32 %v614, %v614
        %v861 = vmul.f32 %v618, %v618
        %v862 = vmul.f32 %v624, %v624
        %v863 = vmul.f32 %v628, %v628
        %v864 = vmul.f32 %v634, %v634
        %v865 = vmul.f32 %v638, %v638
        %v866 = vpack.c.bf16 %v608, %v604
        %v867 = vpack.c.bf16 %v859, %v858
        %v868 = vpack.c.bf16 %v618, %v614
        %v869 = vpack.c.bf16 %v861, %v860
        %v870 = vpack.c.bf16 %v628, %v624
        %v871 = vpack.c.bf16 %v863, %v862
        %v872 = vpack.c.bf16 %v638, %v634
        %v873 = vpack.c.bf16 %v865, %v864
        %v906 = vunpack.c.l.b16 %v824
        %v907 = vunpack.c.h.b16 %v824
        %v908 = vunpack.c.l.b16 %v825
        %v909 = vunpack.c.h.b16 %v825
        %v910 = vunpack.c.l.b16 %v826
        %v911 = vunpack.c.h.b16 %v826
        %v912 = vunpack.c.l.b16 %v827
        %v913 = vunpack.c.h.b16 %v827
        %v914 = vunpack.c.l.b16 %v828
        %v915 = vunpack.c.h.b16 %v828
        %v916 = vunpack.c.l.b16 %v829
        %v917 = vunpack.c.h.b16 %v829
        %v918 = vunpack.c.l.b16 %v830
        %v919 = vunpack.c.h.b16 %v830
        %v920 = vunpack.c.l.b16 %v831
        %v921 = vunpack.c.h.b16 %v831
        %v922 = vunpack.c.l.b16 %v832
        %v923 = vunpack.c.h.b16 %v832
        %v924 = vunpack.c.l.b16 %v833
        %v925 = vunpack.c.h.b16 %v833
        %v926 = vunpack.c.l.b16 %v834
        %v927 = vunpack.c.h.b16 %v834
        %v928 = vunpack.c.l.b16 %v835
        %v929 = vunpack.c.h.b16 %v835
        %v930 = vunpack.c.l.b16 %v836
        %v931 = vunpack.c.h.b16 %v836
        %v932 = vunpack.c.l.b16 %v837
        %v933 = vunpack.c.h.b16 %v837
        %v934 = vunpack.c.l.b16 %v838
        %v935 = vunpack.c.h.b16 %v838
        %v936 = vunpack.c.l.b16 %v839
        %v937 = vunpack.c.h.b16 %v839
        %v938 = vunpack.c.l.b16 %v840
        %v939 = vunpack.c.h.b16 %v840
        %v940 = vunpack.c.l.b16 %v841
        %v941 = vunpack.c.h.b16 %v841
        %v942 = vunpack.c.l.b16 %v842
        %v943 = vunpack.c.h.b16 %v842
        %v944 = vunpack.c.l.b16 %v843
        %v945 = vunpack.c.h.b16 %v843
        %v946 = vunpack.c.l.b16 %v844
        %v947 = vunpack.c.h.b16 %v844
        %v948 = vunpack.c.l.b16 %v845
        %v949 = vunpack.c.h.b16 %v845
        %v950 = vunpack.c.l.b16 %v846
        %v951 = vunpack.c.h.b16 %v846
        %v952 = vunpack.c.l.b16 %v847
        %v953 = vunpack.c.h.b16 %v847
        %v954 = vunpack.c.l.b16 %v848
        %v955 = vunpack.c.h.b16 %v848
        %v956 = vunpack.c.l.b16 %v849
        %v957 = vunpack.c.h.b16 %v849
        %v958 = vunpack.c.l.b16 %v850
        %v959 = vunpack.c.h.b16 %v850
        %v960 = vunpack.c.l.b16 %v851
        %v961 = vunpack.c.h.b16 %v851
        %v962 = vunpack.c.l.b16 %v852
        %v963 = vunpack.c.h.b16 %v852
        %v964 = vunpack.c.l.b16 %v853
        %v965 = vunpack.c.h.b16 %v853
        %v966 = vunpack.c.l.b16 %v854
        %v967 = vunpack.c.h.b16 %v854
        %v968 = vunpack.c.l.b16 %v855
        %v969 = vunpack.c.h.b16 %v855
        %v970 = vpack.c.b16 %v908, %v906
        %v971 = vpack.c.b16 %v909, %v907
        %v972 = vpack.c.b16 %v912, %v910
        %v973 = vpack.c.b16 %v913, %v911
        %v974 = vpack.c.b16 %v916, %v914
        %v975 = vpack.c.b16 %v917, %v915
        %v976 = vpack.c.b16 %v920, %v918
        %v977 = vpack.c.b16 %v921, %v919
        %v978 = vpack.c.b16 %v924, %v922
        %v979 = vpack.c.b16 %v925, %v923
        %v980 = vpack.c.b16 %v928, %v926
        %v981 = vpack.c.b16 %v929, %v927
        %v982 = vpack.c.b16 %v932, %v930
        %v983 = vpack.c.b16 %v933, %v931
        %v984 = vpack.c.b16 %v936, %v934
        %v985 = vpack.c.b16 %v937, %v935
        %v986 = vpack.c.b16 %v940, %v938
        %v987 = vpack.c.b16 %v941, %v939
        %v988 = vpack.c.b16 %v944, %v942
        %v989 = vpack.c.b16 %v945, %v943
        %v990 = vpack.c.b16 %v948, %v946
        %v991 = vpack.c.b16 %v949, %v947
        %v992 = vpack.c.b16 %v952, %v950
        %v993 = vpack.c.b16 %v953, %v951
        %v994 = vpack.c.b16 %v956, %v954
        %v995 = vpack.c.b16 %v957, %v955
        %v996 = vpack.c.b16 %v960, %v958
        %v997 = vpack.c.b16 %v961, %v959
        %v998 = vpack.c.b16 %v964, %v962
        %v999 = vpack.c.b16 %v965, %v963
        %v1000 = vpack.c.b16 %v968, %v966
        %v1001 = vpack.c.b16 %v969, %v967
        %1034 = vmatprep.subr.bf16.mxu0 %v971
        %1035 = vmatpush1.bf16.msra.mxu0 %v970
        %1036 = vmatprep.subr.bf16.mxu0 %v973
        %1037 = vmatpush1.bf16.msra.mxu0 %v972
        %1038 = vmatprep.subr.bf16.mxu0 %v975
        %1039 = vmatpush1.bf16.msra.mxu0 %v974
        %1040 = vmatprep.subr.bf16.mxu0 %v977
        %1041 = vmatpush1.bf16.msra.mxu0 %v976
        %1042 = vmatprep.subr.bf16.mxu0 %v979
        %1043 = vmatpush1.bf16.msra.mxu0 %v978
        %1044 = vmatprep.subr.bf16.mxu0 %v981
        %1045 = vmatpush1.bf16.msra.mxu0 %v980
        %1046 = vmatprep.subr.bf16.mxu0 %v983
        %1047 = vmatpush1.bf16.msra.mxu0 %v982
        %1048 = vmatprep.subr.bf16.mxu0 %v985
        %1049 = vmatpush1.bf16.msra.mxu0 %v984
        %1050 = vmatprep.subr.bf16.mxu0 %v987
        %1051 = vmatpush1.bf16.msra.mxu0 %v986
        %1052 = vmatprep.subr.bf16.mxu0 %v989
        %1053 = vmatpush1.bf16.msra.mxu0 %v988
        %1054 = vmatprep.subr.bf16.mxu0 %v991
        %1055 = vmatpush1.bf16.msra.mxu0 %v990
        %1056 = vmatprep.subr.bf16.mxu0 %v993
        %1057 = vmatpush1.bf16.msra.mxu0 %v992
        %1058 = vmatprep.subr.bf16.mxu0 %v995
        %1059 = vmatpush1.bf16.msra.mxu0 %v994
        %1060 = vmatprep.subr.bf16.mxu0 %v997
        %1061 = vmatpush1.bf16.msra.mxu0 %v996
        %1062 = vmatprep.subr.bf16.mxu0 %v999
        %1063 = vmatpush1.bf16.msra.mxu0 %v998
        %1064 = vmatprep.subr.bf16.mxu0 %v1001
        %1065 = vmatpush1.bf16.msra.mxu0 %v1000
        %1066 = vmatprep.mubr.bf16.mxu0 %v867
        %1067 = vmatmul.mubr.bf16.gmra.mrb[0].mxu0 %v866
        %v1068 = vpop.f32.mrb[0].mxu0
        %v1069 = vadd.f32 0.0, %v1068
        %v1070 = vpop.f32.mrb[0].mxu0
        %v1071 = vadd.f32 0.0, %v1070
        %v1072 = vpop.f32.mrb[0].mxu0
        %v1073 = vadd.f32 0.0, %v1072
        %v1074 = vpop.f32.mrb[0].mxu0
        %v1075 = vadd.f32 0.0, %v1074
        %1076 = vmatprep.mubr.bf16.mxu0 %v869
        %1077 = vmatmul.mubr.bf16.gmra.mrb[0].mxu0 %v868
        %v1078 = vpop.f32.mrb[0].mxu0
        %v1079 = vadd.f32 0.0, %v1078
        %v1080 = vpop.f32.mrb[0].mxu0
        %v1081 = vadd.f32 0.0, %v1080
        %v1082 = vpop.f32.mrb[0].mxu0
        %v1083 = vadd.f32 0.0, %v1082
        %v1084 = vpop.f32.mrb[0].mxu0
        %v1085 = vadd.f32 0.0, %v1084
        %1086 = vmatprep.mubr.bf16.mxu0 %v871
        %1087 = vmatmul.mubr.bf16.gmra.mrb[0].mxu0 %v870
        %v1088 = vpop.f32.mrb[0].mxu0
        %v1089 = vadd.f32 0.0, %v1088
        %v1090 = vpop.f32.mrb[0].mxu0
        %v1091 = vadd.f32 0.0, %v1090
        %v1092 = vpop.f32.mrb[0].mxu0
        %v1093 = vadd.f32 0.0, %v1092
        %v1094 = vpop.f32.mrb[0].mxu0
        %v1095 = vadd.f32 0.0, %v1094
        %1096 = vmatprep.mubr.bf16.mxu0 %v873
        %1097 = vmatmul.mubr.bf16.gmra.mrb[0].mxu0 %v872
        %v1098 = vpop.f32.mrb[0].mxu0
        %v1099 = vadd.f32 0.0, %v1098
        %v1100 = vpop.f32.mrb[0].mxu0
        %v1101 = vadd.f32 0.0, %v1100
        %v1102 = vpop.f32.mrb[0].mxu0
        %v1103 = vadd.f32 0.0, %v1102
        %v1104 = vpop.f32.mrb[0].mxu0
        %v1105 = vadd.f32 0.0, %v1104
        %1106 = vdwg.mxu0
        %v1107 = vmul.f32 %v1069, %v1069
        %v1108 = vmul.f32 %v1073, %v1073
        %v1109 = vmul.f32 %v1079, %v1079
        %v1110 = vmul.f32 %v1083, %v1083
        %v1111 = vmul.f32 %v1089, %v1089
        %v1112 = vmul.f32 %v1093, %v1093
        %v1113 = vmul.f32 %v1099, %v1099
        %v1114 = vmul.f32 %v1103, %v1103
        %v1115 = vsub.f32 %v1071, %v1107
        %v1116 = vsub.f32 %v1075, %v1108
        %v1117 = vsub.f32 %v1081, %v1109
        %v1118 = vsub.f32 %v1085, %v1110
        %v1119 = vsub.f32 %v1091, %v1111
        %v1120 = vsub.f32 %v1095, %v1112
        %v1121 = vsub.f32 %v1101, %v1113
        %v1122 = vsub.f32 %v1105, %v1114
        %v1123 = vmax.f32 %v1115, 0.0
        %v1124 = vmax.f32 %v1116, 0.0
        %v1125 = vmax.f32 %v1117, 0.0
        %v1126 = vmax.f32 %v1118, 0.0
        %v1127 = vmax.f32 %v1119, 0.0
        %v1128 = vmax.f32 %v1120, 0.0
        %v1129 = vmax.f32 %v1121, 0.0
        %v1130 = vmax.f32 %v1122, 0.0
        %v1131 = vsub.f32 %v604, %v1069
        %v1132 = vsub.f32 %v608, %v1073
        %v1133 = vsub.f32 %v614, %v1079
        %v1134 = vsub.f32 %v618, %v1083
        %v1135 = vsub.f32 %v624, %v1089
        %v1136 = vsub.f32 %v628, %v1093
        %v1137 = vsub.f32 %v634, %v1099
        %v1138 = vsub.f32 %v638, %v1103
        %v1139 = vadd.f32 %v1123, 1e-05
        %v1140 = vadd.f32 %v1124, 1e-05
        %v1141 = vadd.f32 %v1125, 1e-05
        %v1142 = vadd.f32 %v1126, 1e-05
        %v1143 = vadd.f32 %v1127, 1e-05
        %v1144 = vadd.f32 %v1128, 1e-05
        %v1145 = vadd.f32 %v1129, 1e-05
        %v1146 = vadd.f32 %v1130, 1e-05
        %v1147 = vrsqrt.pop %v1139
        %v1148 = vrsqrt.pop %v1140
        %v1149 = vrsqrt.pop %v1141
        %v1150 = vrsqrt.pop %v1142
        %v1151 = vrsqrt.pop %v1143
        %v1152 = vrsqrt.pop %v1144
        %v1153 = vrsqrt.pop %v1145
        %v1154 = vrsqrt.pop %v1146
        %v1155 = vmul.f32 %v1131, %v1147
        %v1156 = vmul.f32 %v1132, %v1148
        %v1157 = vmul.f32 %v1133, %v1149
        %v1158 = vmul.f32 %v1134, %v1150
        %v1159 = vmul.f32 %v1135, %v1151
        %v1160 = vmul.f32 %v1136, %v1152
        %v1161 = vmul.f32 %v1137, %v1153
        %v1162 = vmul.f32 %v1138, %v1154
        %v1164 = vlaneseq
        %v1165 = vshrl.u32 %v1164, 7
        %v1166 = vsub.s32 0, %v1165
        %v1167 = vrot.slane %v856, %v1166
        %v1169 = vmul.f32 %v1155, %v1167
        %v1170 = vmul.f32 %v1156, %v1167
        %v1171 = vmul.f32 %v1157, %v1167
        %v1172 = vmul.f32 %v1158, %v1167
        %v1173 = vmul.f32 %v1159, %v1167
        %v1174 = vmul.f32 %v1160, %v1167
        %v1175 = vmul.f32 %v1161, %v1167
        %v1176 = vmul.f32 %v1162, %v1167
        %v1178 = vlaneseq
        %v1179 = vshrl.u32 %v1178, 7
        %v1180 = vsub.s32 0, %v1179
        %v1181 = vrot.slane %v857, %v1180
        %v1183 = vadd.f32 %v1169, %v1181
        %v1184 = vadd.f32 %v1170, %v1181
        %v1185 = vadd.f32 %v1171, %v1181
        %v1186 = vadd.f32 %v1172, %v1181
        %v1187 = vadd.f32 %v1173, %v1181
        %v1188 = vadd.f32 %v1174, %v1181
        %v1189 = vadd.f32 %v1175, %v1181
        %v1190 = vadd.f32 %v1176, %v1181
        %v1191 = vmul.f32 %v1183, %v786
        %v1192 = vmul.f32 %v1184, %v790
        %v1193 = vmul.f32 %v1185, %v796
        %v1194 = vmul.f32 %v1186, %v800
        %v1195 = vmul.f32 %v1187, %v806
        %v1196 = vmul.f32 %v1188, %v810
        %v1197 = vmul.f32 %v1189, %v816
        %v1198 = vmul.f32 %v1190, %v820
        %v1199 = vadd.f32 %v1191, %v788
        %v1200 = vadd.f32 %v1192, %v792
        %v1201 = vadd.f32 %v1193, %v798
        %v1202 = vadd.f32 %v1194, %v802
        %v1203 = vadd.f32 %v1195, %v808
        %v1204 = vadd.f32 %v1196, %v812
        %v1205 = vadd.f32 %v1197, %v818
        %v1206 = vadd.f32 %v1198, %v822
        %v1207 = vxor.u32 %v1199, 2147483648
        %v1208 = vxor.u32 %v1200, 2147483648
        %v1209 = vxor.u32 %v1201, 2147483648
        %v1210 = vxor.u32 %v1202, 2147483648
        %v1211 = vxor.u32 %v1203, 2147483648
        %v1212 = vxor.u32 %v1204, 2147483648
        %v1213 = vxor.u32 %v1205, 2147483648
        %v1214 = vxor.u32 %v1206, 2147483648
        %v1215 = vmul.f32 %v1207, 1.442695
        %v1216 = vpow.pop %v1215
        %v1217 = vmul.f32 %v1208, 1.442695
        %v1218 = vpow.pop %v1217
        %v1219 = vmul.f32 %v1209, 1.442695
        %v1220 = vpow.pop %v1219
        %v1221 = vmul.f32 %v1210, 1.442695
        %v1222 = vpow.pop %v1221
        %v1223 = vmul.f32 %v1211, 1.442695
        %v1224 = vpow.pop %v1223
        %v1225 = vmul.f32 %v1212, 1.442695
        %v1226 = vpow.pop %v1225
        %v1227 = vmul.f32 %v1213, 1.442695
        %v1228 = vpow.pop %v1227
        %v1229 = vmul.f32 %v1214, 1.442695
        %v1230 = vpow.pop %v1229
        %v1231 = vadd.f32 %v1216, 1.0
        %v1232 = vadd.f32 %v1218, 1.0
        %v1233 = vadd.f32 %v1220, 1.0
        %v1234 = vadd.f32 %v1222, 1.0
        %v1235 = vadd.f32 %v1224, 1.0
        %v1236 = vadd.f32 %v1226, 1.0
        %v1237 = vadd.f32 %v1228, 1.0
        %v1238 = vadd.f32 %v1230, 1.0
        %v1239 = vrcp.pop %v1231
        %v1240 = vmul.f32 1.0, %v1239
        %v1241 = vrcp.pop %v1232
        %v1242 = vmul.f32 1.0, %v1241
        %v1243 = vrcp.pop %v1233
        %v1244 = vmul.f32 1.0, %v1243
        %v1245 = vrcp.pop %v1234
        %v1246 = vmul.f32 1.0, %v1245
        %v1247 = vrcp.pop %v1235
        %v1248 = vmul.f32 1.0, %v1247
        %v1249 = vrcp.pop %v1236
        %v1250 = vmul.f32 1.0, %v1249
        %v1251 = vrcp.pop %v1237
        %v1252 = vmul.f32 1.0, %v1251
        %v1253 = vrcp.pop %v1238
        %v1254 = vmul.f32 1.0, %v1253
        %v1255 = vmul.f32 %v1199, %v1240
        %v1256 = vmul.f32 %v1200, %v1242
        %v1257 = vmul.f32 %v1201, %v1244
        %v1258 = vmul.f32 %v1202, %v1246
        %v1259 = vmul.f32 %v1203, %v1248
        %v1260 = vmul.f32 %v1204, %v1250
        %v1261 = vmul.f32 %v1205, %v1252
        %v1262 = vmul.f32 %v1206, %v1254
        %v1263 = vpack.c.bf16 %v1256, %v1255
        %v1264 = vpack.c.bf16 %v1258, %v1257
        %v1265 = vpack.c.bf16 %v1260, %v1259
        %v1266 = vpack.c.bf16 %v1262, %v1261
        %v1267 = vld [vmem:[%s6] sm:$0xf]
        %v1268 = vld [vmem:[%s6 + $0x4] sm:$0xf]
        %v1269 = vld [vmem:[%s6 + $0x8] sm:$0xf]
        %v1270 = vld [vmem:[%s6 + $0xc] sm:$0xf]
        %v1271 = vld [vmem:[%s6 + $0x10] sm:$0xf]
        %v1272 = vld [vmem:[%s6 + $0x14] sm:$0xf]
        %v1273 = vld [vmem:[%s6 + $0x18] sm:$0xf]
        %v1274 = vld [vmem:[%s6 + $0x1c] sm:$0xf]
        %v1275 = vld [vmem:[%s6 + $0x20] sm:$0xf]
        %v1276 = vld [vmem:[%s6 + $0x24] sm:$0xf]
        %v1277 = vld [vmem:[%s6 + $0x28] sm:$0xf]
        %v1278 = vld [vmem:[%s6 + $0x2c] sm:$0xf]
        %v1279 = vld [vmem:[%s6 + $0x30] sm:$0xf]
        %v1280 = vld [vmem:[%s6 + $0x34] sm:$0xf]
        %v1281 = vld [vmem:[%s6 + $0x38] sm:$0xf]
        %v1282 = vld [vmem:[%s6 + $0x3c] sm:$0xf]
        %v1283 = vld [vmem:[%s7] sm:$0x1]
        %v1285 = vlaneseq
        %v1286 = vshrl.u32 %v1285, 7
        %v1287 = vsub.s32 0, %v1286
        %v1288 = vrot.slane %v1283, %v1287
        %v1306 = vunpack.c.l.b16 %v1267
        %v1307 = vunpack.c.l.b16 %v1268
        %v1308 = vunpack.c.l.b16 %v1269
        %v1309 = vunpack.c.l.b16 %v1270
        %v1310 = vunpack.c.l.b16 %v1271
        %v1311 = vunpack.c.l.b16 %v1272
        %v1312 = vunpack.c.l.b16 %v1273
        %v1313 = vunpack.c.l.b16 %v1274
        %v1314 = vunpack.c.l.b16 %v1275
        %v1315 = vunpack.c.l.b16 %v1276
        %v1316 = vunpack.c.l.b16 %v1277
        %v1317 = vunpack.c.l.b16 %v1278
        %v1318 = vunpack.c.l.b16 %v1279
        %v1319 = vunpack.c.l.b16 %v1280
        %v1320 = vunpack.c.l.b16 %v1281
        %v1321 = vunpack.c.l.b16 %v1282
        %v1322 = vpack.c.b16 %v1307, %v1306
        %v1323 = vpack.c.b16 %v1309, %v1308
        %v1324 = vpack.c.b16 %v1311, %v1310
        %v1325 = vpack.c.b16 %v1313, %v1312
        %v1326 = vpack.c.b16 %v1315, %v1314
        %v1327 = vpack.c.b16 %v1317, %v1316
        %v1328 = vpack.c.b16 %v1319, %v1318
        %v1329 = vpack.c.b16 %v1321, %v1320
        %1338 = vmatprep.subr.bf16.mxu0 0
        %1339 = vmatpush1.bf16.msra.mxu0 %v1322
        %1340 = vmatprep.subr.bf16.mxu0 0
        %1341 = vmatpush1.bf16.msra.mxu0 %v1323
        %1342 = vmatprep.subr.bf16.mxu0 0
        %1343 = vmatpush1.bf16.msra.mxu0 %v1324
        %1344 = vmatprep.subr.bf16.mxu0 0
        %1345 = vmatpush1.bf16.msra.mxu0 %v1325
        %1346 = vmatprep.subr.bf16.mxu0 0
        %1347 = vmatpush1.bf16.msra.mxu0 %v1326
        %1348 = vmatprep.subr.bf16.mxu0 0
        %1349 = vmatpush1.bf16.msra.mxu0 %v1327
        %1350 = vmatprep.subr.bf16.mxu0 0
        %1351 = vmatpush1.bf16.msra.mxu0 %v1328
        %1352 = vmatprep.subr.bf16.mxu0 0
        %1353 = vmatpush1.bf16.msra.mxu0 %v1329
        %1354 = vmatprep.subr.bf16.mxu0 0
        %1355 = vmatpush1.bf16.msra.mxu0 0
        %1356 = vmatprep.subr.bf16.mxu0 0
        %1357 = vmatpush1.bf16.msra.mxu0 0
        %1358 = vmatprep.subr.bf16.mxu0 0
        %1359 = vmatpush1.bf16.msra.mxu0 0
        %1360 = vmatprep.subr.bf16.mxu0 0
        %1361 = vmatpush1.bf16.msra.mxu0 0
        %1362 = vmatprep.subr.bf16.mxu0 0
        %1363 = vmatpush1.bf16.msra.mxu0 0
        %1364 = vmatprep.subr.bf16.mxu0 0
        %1365 = vmatpush1.bf16.msra.mxu0 0
        %1366 = vmatprep.subr.bf16.mxu0 0
        %1367 = vmatpush1.bf16.msra.mxu0 0
        %1368 = vmatprep.subr.bf16.mxu0 0
        %1369 = vmatpush1.bf16.msra.mxu0 0
        %1370 = vmatprep.mubr.bf16.mxu0 0
        %1371 = vmatmul.mubr.bf16.gmra.mrb[0].mxu0 %v1263
        %v1372 = vpop.f32.mrb[0].mxu0
        %v1373 = vadd.f32 %v1288, %v1372
        %v1374 = vpop.f32.mrb[0].mxu0
        %v1375 = vpop.f32.mrb[0].mxu0
        %v1376 = vadd.f32 %v1288, %v1375
        %v1377 = vpop.f32.mrb[0].mxu0
        %1378 = vmatprep.mubr.bf16.mxu0 0
        %1379 = vmatmul.mubr.bf16.gmra.mrb[0].mxu0 %v1264
        %v1380 = vpop.f32.mrb[0].mxu0
        %v1381 = vadd.f32 %v1288, %v1380
        %v1382 = vpop.f32.mrb[0].mxu0
        %v1383 = vpop.f32.mrb[0].mxu0
        %v1384 = vadd.f32 %v1288, %v1383
        %v1385 = vpop.f32.mrb[0].mxu0
        %1386 = vmatprep.mubr.bf16.mxu0 0
        %1387 = vmatmul.mubr.bf16.gmra.mrb[0].mxu0 %v1265
        %v1388 = vpop.f32.mrb[0].mxu0
        %v1389 = vadd.f32 %v1288, %v1388
        %v1390 = vpop.f32.mrb[0].mxu0
        %v1391 = vpop.f32.mrb[0].mxu0
        %v1392 = vadd.f32 %v1288, %v1391
        %v1393 = vpop.f32.mrb[0].mxu0
        %1394 = vmatprep.mubr.bf16.mxu0 0
        %1395 = vmatmul.mubr.bf16.gmra.mrb[0].mxu0 %v1266
        %v1396 = vpop.f32.mrb[0].mxu0
        %v1397 = vadd.f32 %v1288, %v1396
        %v1398 = vpop.f32.mrb[0].mxu0
        %v1399 = vpop.f32.mrb[0].mxu0
        %v1400 = vadd.f32 %v1288, %v1399
        %v1401 = vpop.f32.mrb[0].mxu0
        %1402 = vdwg.mxu0
        %v1403 = vadd.f32 %v1373, %v606
        %v1404 = vadd.f32 %v1376, %v610
        %v1405 = vadd.f32 %v1381, %v616
        %v1406 = vadd.f32 %v1384, %v620
        %v1407 = vadd.f32 %v1389, %v626
        %v1408 = vadd.f32 %v1392, %v630
        %v1409 = vadd.f32 %v1397, %v636
        %v1410 = vadd.f32 %v1400, %v640
        %v1411 = vld [vmem:[%s10] sm:$0x1]
        %v1412 = vld [vmem:[%s11] sm:$0x1]
        %v1413 = vmul.f32 %v1403, %v1403
        %v1414 = vmul.f32 %v1404, %v1404
        %v1415 = vmul.f32 %v1405, %v1405
        %v1416 = vmul.f32 %v1406, %v1406
        %v1417 = vmul.f32 %v1407, %v1407
        %v1418 = vmul.f32 %v1408, %v1408
        %v1419 = vmul.f32 %v1409, %v1409
        %v1420 = vmul.f32 %v1410, %v1410
        %v1421 = vpack.c.bf16 %v1404, %v1403
        %v1422 = vpack.c.bf16 %v1414, %v1413
        %v1423 = vpack.c.bf16 %v1406, %v1405
        %v1424 = vpack.c.bf16 %v1416, %v1415
        %v1425 = vpack.c.bf16 %v1408, %v1407
        %v1426 = vpack.c.bf16 %v1418, %v1417
        %v1427 = vpack.c.bf16 %v1410, %v1409
        %v1428 = vpack.c.bf16 %v1420, %v1419
        %1429 = vmatprep.subr.bf16.mxu0 %v971
        %1430 = vmatpush1.bf16.msra.mxu0 %v970
        %1431 = vmatprep.subr.bf16.mxu0 %v973
        %1432 = vmatpush1.bf16.msra.mxu0 %v972
        %1433 = vmatprep.subr.bf16.mxu0 %v975
        %1434 = vmatpush1.bf16.msra.mxu0 %v974
        %1435 = vmatprep.subr.bf16.mxu0 %v977
        %1436 = vmatpush1.bf16.msra.mxu0 %v976
        %1437 = vmatprep.subr.bf16.mxu0 %v979
        %1438 = vmatpush1.bf16.msra.mxu0 %v978
        %1439 = vmatprep.subr.bf16.mxu0 %v981
        %1440 = vmatpush1.bf16.msra.mxu0 %v980
        %1441 = vmatprep.subr.bf16.mxu0 %v983
        %1442 = vmatpush1.bf16.msra.mxu0 %v982
        %1443 = vmatprep.subr.bf16.mxu0 %v985
        %1444 = vmatpush1.bf16.msra.mxu0 %v984
        %1445 = vmatprep.subr.bf16.mxu0 %v987
        %1446 = vmatpush1.bf16.msra.mxu0 %v986
        %1447 = vmatprep.subr.bf16.mxu0 %v989
        %1448 = vmatpush1.bf16.msra.mxu0 %v988
        %1449 = vmatprep.subr.bf16.mxu0 %v991
        %1450 = vmatpush1.bf16.msra.mxu0 %v990
        %1451 = vmatprep.subr.bf16.mxu0 %v993
        %1452 = vmatpush1.bf16.msra.mxu0 %v992
        %1453 = vmatprep.subr.bf16.mxu0 %v995
        %1454 = vmatpush1.bf16.msra.mxu0 %v994
        %1455 = vmatprep.subr.bf16.mxu0 %v997
        %1456 = vmatpush1.bf16.msra.mxu0 %v996
        %1457 = vmatprep.subr.bf16.mxu0 %v999
        %1458 = vmatpush1.bf16.msra.mxu0 %v998
        %1459 = vmatprep.subr.bf16.mxu0 %v1001
        %1460 = vmatpush1.bf16.msra.mxu0 %v1000
        %1461 = vmatprep.mubr.bf16.mxu0 %v1422
        %1462 = vmatmul.mubr.bf16.gmra.mrb[0].mxu0 %v1421
        %v1463 = vpop.f32.mrb[0].mxu0
        %v1464 = vadd.f32 0.0, %v1463
        %v1465 = vpop.f32.mrb[0].mxu0
        %v1466 = vadd.f32 0.0, %v1465
        %v1467 = vpop.f32.mrb[0].mxu0
        %v1468 = vadd.f32 0.0, %v1467
        %v1469 = vpop.f32.mrb[0].mxu0
        %v1470 = vadd.f32 0.0, %v1469
        %1471 = vmatprep.mubr.bf16.mxu0 %v1424
        %1472 = vmatmul.mubr.bf16.gmra.mrb[0].mxu0 %v1423
        %v1473 = vpop.f32.mrb[0].mxu0
        %v1474 = vadd.f32 0.0, %v1473
        %v1475 = vpop.f32.mrb[0].mxu0
        %v1476 = vadd.f32 0.0, %v1475
        %v1477 = vpop.f32.mrb[0].mxu0
        %v1478 = vadd.f32 0.0, %v1477
        %v1479 = vpop.f32.mrb[0].mxu0
        %v1480 = vadd.f32 0.0, %v1479
        %1481 = vmatprep.mubr.bf16.mxu0 %v1426
        %1482 = vmatmul.mubr.bf16.gmra.mrb[0].mxu0 %v1425
        %v1483 = vpop.f32.mrb[0].mxu0
        %v1484 = vadd.f32 0.0, %v1483
        %v1485 = vpop.f32.mrb[0].mxu0
        %v1486 = vadd.f32 0.0, %v1485
        %v1487 = vpop.f32.mrb[0].mxu0
        %v1488 = vadd.f32 0.0, %v1487
        %v1489 = vpop.f32.mrb[0].mxu0
        %v1490 = vadd.f32 0.0, %v1489
        %1491 = vmatprep.mubr.bf16.mxu0 %v1428
        %1492 = vmatmul.mubr.bf16.gmra.mrb[0].mxu0 %v1427
        %v1493 = vpop.f32.mrb[0].mxu0
        %v1494 = vadd.f32 0.0, %v1493
        %v1495 = vpop.f32.mrb[0].mxu0
        %v1496 = vadd.f32 0.0, %v1495
        %v1497 = vpop.f32.mrb[0].mxu0
        %v1498 = vadd.f32 0.0, %v1497
        %v1499 = vpop.f32.mrb[0].mxu0
        %v1500 = vadd.f32 0.0, %v1499
        %1501 = vdwg.mxu0
        %v1502 = vmul.f32 %v1464, %v1464
        %v1503 = vmul.f32 %v1468, %v1468
        %v1504 = vmul.f32 %v1474, %v1474
        %v1505 = vmul.f32 %v1478, %v1478
        %v1506 = vmul.f32 %v1484, %v1484
        %v1507 = vmul.f32 %v1488, %v1488
        %v1508 = vmul.f32 %v1494, %v1494
        %v1509 = vmul.f32 %v1498, %v1498
        %v1510 = vsub.f32 %v1466, %v1502
        %v1511 = vsub.f32 %v1470, %v1503
        %v1512 = vsub.f32 %v1476, %v1504
        %v1513 = vsub.f32 %v1480, %v1505
        %v1514 = vsub.f32 %v1486, %v1506
        %v1515 = vsub.f32 %v1490, %v1507
        %v1516 = vsub.f32 %v1496, %v1508
        %v1517 = vsub.f32 %v1500, %v1509
        %v1518 = vmax.f32 %v1510, 0.0
        %v1519 = vmax.f32 %v1511, 0.0
        %v1520 = vmax.f32 %v1512, 0.0
        %v1521 = vmax.f32 %v1513, 0.0
        %v1522 = vmax.f32 %v1514, 0.0
        %v1523 = vmax.f32 %v1515, 0.0
        %v1524 = vmax.f32 %v1516, 0.0
        %v1525 = vmax.f32 %v1517, 0.0
        %v1526 = vsub.f32 %v1403, %v1464
        %v1527 = vsub.f32 %v1404, %v1468
        %v1528 = vsub.f32 %v1405, %v1474
        %v1529 = vsub.f32 %v1406, %v1478
        %v1530 = vsub.f32 %v1407, %v1484
        %v1531 = vsub.f32 %v1408, %v1488
        %v1532 = vsub.f32 %v1409, %v1494
        %v1533 = vsub.f32 %v1410, %v1498
        %v1534 = vadd.f32 %v1518, 1e-05
        %v1535 = vadd.f32 %v1519, 1e-05
        %v1536 = vadd.f32 %v1520, 1e-05
        %v1537 = vadd.f32 %v1521, 1e-05
        %v1538 = vadd.f32 %v1522, 1e-05
        %v1539 = vadd.f32 %v1523, 1e-05
        %v1540 = vadd.f32 %v1524, 1e-05
        %v1541 = vadd.f32 %v1525, 1e-05
        %v1542 = vrsqrt.pop %v1534
        %v1543 = vrsqrt.pop %v1535
        %v1544 = vrsqrt.pop %v1536
        %v1545 = vrsqrt.pop %v1537
        %v1546 = vrsqrt.pop %v1538
        %v1547 = vrsqrt.pop %v1539
        %v1548 = vrsqrt.pop %v1540
        %v1549 = vrsqrt.pop %v1541
        %v1550 = vmul.f32 %v1526, %v1542
        %v1551 = vmul.f32 %v1527, %v1543
        %v1552 = vmul.f32 %v1528, %v1544
        %v1553 = vmul.f32 %v1529, %v1545
        %v1554 = vmul.f32 %v1530, %v1546
        %v1555 = vmul.f32 %v1531, %v1547
        %v1556 = vmul.f32 %v1532, %v1548
        %v1557 = vmul.f32 %v1533, %v1549
        %v1559 = vlaneseq
        %v1560 = vshrl.u32 %v1559, 7
        %v1561 = vsub.s32 0, %v1560
        %v1562 = vrot.slane %v1411, %v1561
        %v1564 = vmul.f32 %v1550, %v1562
        %v1565 = vmul.f32 %v1551, %v1562
        %v1566 = vmul.f32 %v1552, %v1562
        %v1567 = vmul.f32 %v1553, %v1562
        %v1568 = vmul.f32 %v1554, %v1562
        %v1569 = vmul.f32 %v1555, %v1562
        %v1570 = vmul.f32 %v1556, %v1562
        %v1571 = vmul.f32 %v1557, %v1562
        %v1573 = vlaneseq
        %v1574 = vshrl.u32 %v1573, 7
        %v1575 = vsub.s32 0, %v1574
        %v1576 = vrot.slane %v1412, %v1575
        %v1578 = vadd.f32 %v1564, %v1576
        %v1579 = vadd.f32 %v1565, %v1576
        %v1580 = vadd.f32 %v1566, %v1576
        %v1581 = vadd.f32 %v1567, %v1576
        %v1582 = vadd.f32 %v1568, %v1576
        %v1583 = vadd.f32 %v1569, %v1576
        %v1584 = vadd.f32 %v1570, %v1576
        %v1585 = vadd.f32 %v1571, %v1576
        %v1586 = vxor.u32 %v1578, 2147483648
        %v1587 = vxor.u32 %v1579, 2147483648
        %v1588 = vxor.u32 %v1580, 2147483648
        %v1589 = vxor.u32 %v1581, 2147483648
        %v1590 = vxor.u32 %v1582, 2147483648
        %v1591 = vxor.u32 %v1583, 2147483648
        %v1592 = vxor.u32 %v1584, 2147483648
        %v1593 = vxor.u32 %v1585, 2147483648
        %v1594 = vmul.f32 %v1586, 1.442695
        %v1595 = vpow.pop %v1594
        %v1596 = vmul.f32 %v1587, 1.442695
        %v1597 = vpow.pop %v1596
        %v1598 = vmul.f32 %v1588, 1.442695
        %v1599 = vpow.pop %v1598
        %v1600 = vmul.f32 %v1589, 1.442695
        %v1601 = vpow.pop %v1600
        %v1602 = vmul.f32 %v1590, 1.442695
        %v1603 = vpow.pop %v1602
        %v1604 = vmul.f32 %v1591, 1.442695
        %v1605 = vpow.pop %v1604
        %v1606 = vmul.f32 %v1592, 1.442695
        %v1607 = vpow.pop %v1606
        %v1608 = vmul.f32 %v1593, 1.442695
        %v1609 = vpow.pop %v1608
        %v1610 = vadd.f32 %v1595, 1.0
        %v1611 = vadd.f32 %v1597, 1.0
        %v1612 = vadd.f32 %v1599, 1.0
        %v1613 = vadd.f32 %v1601, 1.0
        %v1614 = vadd.f32 %v1603, 1.0
        %v1615 = vadd.f32 %v1605, 1.0
        %v1616 = vadd.f32 %v1607, 1.0
        %v1617 = vadd.f32 %v1609, 1.0
        %v1618 = vrcp.pop %v1610
        %v1619 = vmul.f32 1.0, %v1618
        %v1620 = vrcp.pop %v1611
        %v1621 = vmul.f32 1.0, %v1620
        %v1622 = vrcp.pop %v1612
        %v1623 = vmul.f32 1.0, %v1622
        %v1624 = vrcp.pop %v1613
        %v1625 = vmul.f32 1.0, %v1624
        %v1626 = vrcp.pop %v1614
        %v1627 = vmul.f32 1.0, %v1626
        %v1628 = vrcp.pop %v1615
        %v1629 = vmul.f32 1.0, %v1628
        %v1630 = vrcp.pop %v1616
        %v1631 = vmul.f32 1.0, %v1630
        %v1632 = vrcp.pop %v1617
        %v1633 = vmul.f32 1.0, %v1632
        %v1634 = vmul.f32 %v1578, %v1619
        %v1635 = vmul.f32 %v1579, %v1621
        %v1636 = vmul.f32 %v1580, %v1623
        %v1637 = vmul.f32 %v1581, %v1625
        %v1638 = vmul.f32 %v1582, %v1627
        %v1639 = vmul.f32 %v1583, %v1629
        %v1640 = vmul.f32 %v1584, %v1631
        %v1641 = vmul.f32 %v1585, %v1633
        %s1642 = scalar_lea.vmem %s464, %s473
        %1643 = vst [vmem:[%s1642] sm:$0xff] %v1634
        %1644 = vst [vmem:[%s1642 + $0x8] sm:$0xff] %v1635
        %1645 = vst [vmem:[%s1642 + $0x10] sm:$0xff] %v1636
        %1646 = vst [vmem:[%s1642 + $0x18] sm:$0xff] %v1637
        %1647 = vst [vmem:[%s1642 + $0x20] sm:$0xff] %v1638
        %1648 = vst [vmem:[%s1642 + $0x28] sm:$0xff] %v1639
        %1649 = vst [vmem:[%s1642 + $0x30] sm:$0xff] %v1640
        %1650 = vst [vmem:[%s1642 + $0x38] sm:$0xff] %v1641
      $region77: #{temporal_resblock.1} parent=71 // loop_footer
        %s472 = sadd.s32 1, %s468
      $region78: #{temporal_resblock.1} parent=71 // loop_footer_branch
        %467 = sbr.rel target = $region74
      $region79: #{temporal_resblock.1} parent=71 // loop_exit
        _
      %s1651 = smul.u32 32, %s24
      %p1652 = scmp.lt.s32.totalorder %s1651, 63
      %s1653 = scalar_select %p1652, %s1651, 63
      %s1654 = smul.addr %s1653, 8
      %s1655 = scalar_lea.vmem %s13, %s1654
      // Predicated region
      $region80: #{temporal_resblock.1} parent=71 // pred_check
        %p1656 = pneg %p325
      $region81: #{temporal_resblock.1} parent=71 // pred_check_branch
        %1658 = sbr.rel (%p1656) target = $region83
      $region82: #{temporal_resblock.1} parent=71 // pred_region
        %s1659 = smul.u32 32, %s24
      $region83: #{temporal_resblock.1} parent=71 // pred_fallthru
        _
    $region72: #{temporal_resblock.1} parent=5 // pred_fallthru
      _
    %p1660 = scmp.le.s32.totalorder 2, %s19
    // Predicated region
    $region84: #{temporal_resblock.1} parent=5 // pred_check
      %p1661 = pneg %p1660
    $region85: #{temporal_resblock.1} parent=5 // pred_check_branch
      %1663 = sbr.rel (%p1661) target = $region87
    $region86: #{temporal_resblock.1} parent=5 // pred_region
      %s1664 = ssub.s32 %s19, 2
      // Predicated region
      $region88: #{temporal_resblock.1} parent=86 // pred_check
        %p1665 = pneg %p331
      $region89: #{temporal_resblock.1} parent=86 // pred_check_branch
        %1667 = sbr.rel (%p1665) target = $region91
      $region90: #{temporal_resblock.1} parent=86 // pred_region
        %s1668 = smul.u32 32, %s25
        %p1669 = scmp.lt.s32.totalorder %s1668, 63
        %s1670 = scalar_select %p1669, %s1668, 63
        %s1671 = smul.addr %s1670, 8
        %s1672 = scalar_lea.vmem %s13, %s1671
      $region91: #{temporal_resblock.1} parent=86 // pred_fallthru
        _
    $region87: #{temporal_resblock.1} parent=5 // pred_fallthru
      _
  $region6: #{temporal_resblock.1} parent=0 // loop_footer
    %s23 = sadd.s32 1, %s19
  $region7: #{temporal_resblock.1} parent=0 // loop_footer_branch
    %18 = sbr.rel target = $region3
  $region8: #{temporal_resblock.1} parent=0 // loop_exit
    _

</llo_original>
